<compile_context>
chip_gen: v7x
topology: tpu7x:2x2x1
jax: 0.10.0
libtpu: 0.0.40
codegen_flags: <defaults>
</compile_context>

<pallas_src>
import functools

import jax
import jax.numpy as jnp
import numpy as np
from jax.experimental import pallas as pl
from jax.experimental.pallas import tpu as pltpu

EPS = 0.25     # construct_incr: incr(z) = z + EPS * sign(z)
GAMMA = 0.25   # construct_rho:  rho(w)  = w + GAMMA * relu(w)
_HI = jax.lax.Precision.HIGHEST
_DEF = jax.lax.Precision.DEFAULT


def _round_up(x, m):
    return ((x + m - 1) // m) * m


# ------------------------------- Pallas kernel --------------------------------

def _input_lrp_kernel(a_ref, rj_ref, zoff_ref, wf_ref, wb_ref, r_ref, sstk_ref, *,
                      offs, out_base, mo_pad, cin, cout, prec):
    """Fused LRP input rule for one image (flat rasters, pixel index in lanes).

    a_ref:    (1, K*K*Cin, Ms_pad)  shifted-Ai stack (tap t rows = Ai shifted by offs[t])
    rj_ref:   (1, Cout,    Ms_pad)  upper-layer relevance on the S raster (0 off-image)
    zoff_ref: (Cout, Ms_pad)        b_rho - (layer_p(lb) + layer_n(ub))   [grid-invariant]
    wf_ref:   (Cout, K*K*Cin)       rho(W) flattened over taps            (forward conv)
    wb_ref:   (2*Cin, K*K*Cout)     [rho(W)^T ; lb*Wp^T + ub*Wn^T] flattened (backward)
    r_ref:    (1, Cin, Mo_pad)      output relevance on the output raster
    sstk_ref: (K*K*Cout, Mo_pad)    VMEM scratch for the shifted-S stack
    """
    a = a_ref[0]                                        # (K*K*Cin, Ms_pad)

    # ---- forward: Z = rho(W) (*) Ai + [b_rho - layer_p(lb) - layer_n(ub)] : one dot ----
    z = zoff_ref[...] + jnp.dot(wf_ref[...], a,
                                preferred_element_type=jnp.float32, precision=prec)
    # incr(Z): epsilon stabilizer.  sign(0) -> +1 guarantees |Z| >= EPS, so the divide
    # never produces inf/nan, even at off-image raster positions (where Rj == 0 -> S == 0).
    z = z + EPS * jnp.where(z >= 0.0, 1.0, -1.0)
    s = rj_ref[0] / z                                   # (Cout, Ms_pad)

    # ---- backward (grad of (Z*S).sum()): stack the K*K shifted copies of S along the
    #      contraction dim once, then a single MXU dot.  Rows [0:Cin) -> Ci (rho weights),
    #      rows [Cin:2Cin) -> -(lb*Cp + ub*Cn). ---------------------------------------
    for t, off in enumerate(offs):
        lo = out_base - off                             # static lane offset per tap
        sstk_ref[t * cout:(t + 1) * cout, :] = s[:, lo:lo + mo_pad]
    acc = jnp.dot(wb_ref[...], sstk_ref[...],
                  preferred_element_type=jnp.float32, precision=prec)   # (2*Cin, Mo_pad)

    center = len(offs) // 2                             # tap with offset 0 == Ai itself
    ai = a[center * cin:(center + 1) * cin, out_base:out_base + mo_pad]
    r_ref[0] = ai * acc[:cin] - acc[cin:]               # Ai*Ci + lb*Cp + ub*Cn


# ------------------------------- glue (JAX) -----------------------------------

def input_lrp_pallas(Rj, Ai, weight, bias, mean, std,
                     w_p=None, b_p=None, w_n=None, b_n=None,
                     precision=_DEF):
    """LRP input rule.  Rj: [B,Cout,H,W], Ai: [B,Cin,H,W] (NCHW, like PyTorch).
    weight: [Cout,Cin,K,K] (stride-1 'same' Conv2d), bias: [Cout], mean/std: [Cin].
    (w_p,b_p)/(w_n,b_n) are layer_p / layer_n parameters; default = plain clones."""
    f32 = jnp.float32
    B, Cout, H, W = Rj.shape
    _, Cin, _, _ = Ai.shape
    K = weight.shape[-1]
    assert weight.shape == (Cout, Cin, K, K) and K % 2 == 1, \
        "stride-1 'same' Conv2d with odd kernel assumed"
    assert mean.shape == (Cin,) and std.shape == (Cin,)

    weight, bias = weight.astype(f32), bias.astype(f32)
    w_p = weight if w_p is None else w_p.astype(f32)
    b_p = bias if b_p is None else b_p.astype(f32)
    w_n = weight if w_n is None else w_n.astype(f32)
    b_n = bias if b_n is None else b_n.astype(f32)

    # __init__: layer.weight = rho(weight); layer.bias = keep_conservative(bias)
    w_rho = weight + GAMMA * jnp.maximum(weight, 0.0)
    b_rho = bias

    lb = ((0.0 - mean) / std).astype(f32)               # (Cin,)  per-channel constants
    ub = ((0.0 + mean) / std).astype(f32)

    # ---- raster geometry: shared width Wp, whole-row margins, 128-padded lane dims ----
    p = K // 2
    Wp = W + 2 * p
    Hs = H + 4 * p                      # S raster rows: image rows live at [2p, 2p+H)
    Ms = Hs * Wp                        # flat raster on which Rj / Z / S live
    Mo = H * Wp                         # output raster (the H valid rows, full width)
    maxoff = p * Wp + p                 # largest |flat offset| of a KxK tap
    out_base = 2 * p * Wp               # flat offset of the output raster inside S raster
    Mo_pad = _round_up(Mo, 128)
    Ms_pad = _round_up(max(Ms, out_base + maxoff + Mo_pad), 128)
    offs = tuple((ky - p) * Wp + (kx - p) for ky in range(K) for kx in range(K))
    KK = K * K

    # ---- batch-independent lb/ub branch: computed once in XLA (tiny) -------------
    def conv_nchw(x, w, b):
        return jax.lax.conv_general_dilated(
            x, w, (1, 1), ((p, p), (p, p)),
            dimension_numbers=("NCHW", "OIHW", "NCHW"), precision=_HI
        ) + b[None, :, None, None]

    lb_img = jnp.broadcast_to(lb[None, :, None, None], (1, Cin, H, W))
    ub_img = jnp.broadcast_to(ub[None, :, None, None], (1, Cin, H, W))
    zpn = conv_nchw(lb_img, w_p, b_p) + conv_nchw(ub_img, w_n, b_n)      # (1,Cout,H,W)
    zoff = b_rho[:, None, None] - zpn[0]                                 # (Cout,H,W)
    zoff = jnp.pad(zoff, ((0, 0), (2 * p, 2 * p), (p, p))).reshape(Cout, Ms)
    zoff = jnp.pad(zoff, ((0, 0), (0, Ms_pad - Ms)))                     # (Cout, Ms_pad)

    # ---- lane-dense streamed rasters (one 2D pad each + fused tail pad) ----------
    rj_s = jnp.pad(Rj.astype(f32),
                   ((0, 0), (0, 0), (2 * p, 2 * p), (p, p))).reshape(B, Cout, Ms)
    rj_s = jnp.pad(rj_s, ((0, 0), (0, 0), (0, Ms_pad - Ms)))             # (B,Cout,Ms_pad)

    a_s = jnp.pad(Ai.astype(f32),
                  ((0, 0), (0, 0), (2 * p, 2 * p), (p, p))).reshape(B, Cin, Ms)
    a_ext = jnp.pad(a_s, ((0, 0), (0, 0), (maxoff, maxoff + Ms_pad - Ms)))
    # shifted-Ai stack: tap t rows = Ai shifted by offs[t]  -> (B, K*K*Cin, Ms_pad)
    a_stack = jnp.concatenate(
        [a_ext[:, :, maxoff + off: maxoff + off + Ms_pad] for off in offs], axis=1)

    # ---- per-tap weights flattened into single-matmul operands -------------------
    wf = jnp.transpose(w_rho, (0, 2, 3, 1)).reshape(Cout, KK * Cin)      # forward
    wb1 = jnp.transpose(w_rho, (1, 2, 3, 0)).reshape(Cin, KK * Cout)     # dAi path
    wb2 = (lb[:, None, None, None] * jnp.transpose(w_p, (1, 2, 3, 0))
           + ub[:, None, None, None] * jnp.transpose(w_n, (1, 2, 3, 0))
           ).reshape(Cin, KK * Cout)                                     # lb/ub path
    wb = jnp.concatenate([wb1, wb2], axis=0)                             # (2*Cin, KK*Cout)

    kernel = functools.partial(_input_lrp_kernel, offs=offs, out_base=out_base,
                               mo_pad=Mo_pad, cin=Cin, cout=Cout, prec=precision)

    out = pl.pallas_call(
        kernel,
        out_shape=jax.ShapeDtypeStruct((B, Cin, Mo_pad), f32),
        grid=(B,),
        in_specs=[
            pl.BlockSpec((1, KK * Cin, Ms_pad), lambda b: (b, 0, 0)),    # shifted-Ai stack
            pl.BlockSpec((1, Cout, Ms_pad), lambda b: (b, 0, 0)),        # Rj raster
            pl.BlockSpec((Cout, Ms_pad), lambda b: (0, 0)),              # zoff (invariant)
            pl.BlockSpec((Cout, KK * Cin), lambda b: (0, 0)),            # fwd weights
            pl.BlockSpec((2 * Cin, KK * Cout), lambda b: (0, 0)),        # bwd weights
        ],
        out_specs=pl.BlockSpec((1, Cin, Mo_pad), lambda b: (b, 0, 0)),
        scratch_shapes=[pltpu.VMEM((KK * Cout, Mo_pad), f32)],           # shifted-S stack
        compiler_params=pltpu.CompilerParams(
            dimension_semantics=("parallel",),     # one image per TensorCore on v7x
            vmem_limit_bytes=48 * 1024 * 1024),    # 48 MiB: safe on v5e/v6e/v7x
    )(a_stack, rj_s, zoff, wf, wb)

    # back to NCHW: single slice of the (small) output tensor
    return out[:, :, :Mo].reshape(B, Cin, H, Wp)[:, :, :, p:p + W]


# --------------------------- pure-JAX reference --------------------------------

def _reference(Rj, Ai, weight, bias, mean, std, w_p, b_p, w_n, b_n):
    K = weight.shape[-1]
    p = K // 2
    w_rho = weight + GAMMA * jnp.maximum(weight, 0.0)
    b_rho = bias
    lb = jnp.broadcast_to(((0.0 - mean) / std)[None, :, None, None], Ai.shape)
    ub = jnp.broadcast_to(((0.0 + mean) / std)[None, :, None, None], Ai.shape)

    def conv(x, w, b):
        return jax.lax.conv_general_dilated(
            x, w, (1, 1), ((p, p), (p, p)),
            dimension_numbers=("NCHW", "OIHW", "NCHW"), precision=_HI
        ) + b[None, :, None, None]

    def zfun(a, l, u):
        return conv(a, w_rho, b_rho) - conv(l, w_p, b_p) - conv(u, w_n, b_n)

    z = zfun(Ai, lb, ub)
    z = z + EPS * jnp.where(z >= 0, 1.0, -1.0)
    s = Rj / z
    _, vjp = jax.vjp(zfun, Ai, lb, ub)
    ci, cp, cn = vjp(s)
    return Ai * ci + lb * cp + ub * cn


if __name__ == "__main__":
    B, Cin, Cout, H, W, K = 2, 4, 8, 16, 16, 3
    key = jax.random.PRNGKey(0)
    k1, k2, k3, k4 = jax.random.split(key, 4)
    Ai = jax.random.normal(k1, (B, Cin, H, W), jnp.float32)
    Rj = jax.random.normal(k2, (B, Cout, H, W), jnp.float32)
    weight = 0.2 * jax.random.normal(k3, (Cout, Cin, K, K), jnp.float32)
    bias = 0.1 * jax.random.normal(k4, (Cout,), jnp.float32)
    mean = jnp.array([0.485, 0.456, 0.406, 0.450], jnp.float32)
    std = jnp.array([0.229, 0.224, 0.225, 0.230], jnp.float32)

    # f32 ground truth (module as literally written: layer_p / layer_n = plain clones).
    ref = jax.block_until_ready(
        _reference(Rj, Ai, weight, bias, mean, std, weight, bias, weight, bias))

    # (1) algorithm check: HIGHEST-precision MXU path must match the f32 reference.
    out_hi = jax.block_until_ready(
        input_lrp_pallas(Rj, Ai, weight, bias, mean, std, precision=_HI))
    np.testing.assert_allclose(np.asarray(out_hi), np.asarray(ref), rtol=1e-3, atol=1e-3)
    assert out_hi.shape == Ai.shape and bool(jnp.all(jnp.isfinite(out_hi)))

    # (2) production path: DEFAULT precision (bf16-pass MXU per the perf review).
    #     EPS=0.25 keeps S = Rj/Z well-conditioned; check a global relative bound.
    out_lo = jax.block_until_ready(input_lrp_pallas(Rj, Ai, weight, bias, mean, std))
    rel = float(jnp.linalg.norm(out_lo - ref) / jnp.linalg.norm(ref))
    assert rel < 2e-2, f"DEFAULT-precision relative error too large: {rel}"
    assert bool(jnp.all(jnp.isfinite(out_lo)))

    # (3) canonical z^B-style clamped-weight clones (generic lb/ub path), DEFAULT precision.
    w_pos = jnp.maximum(weight, 0.0)
    w_neg = jnp.minimum(weight, 0.0)
    ref2 = jax.block_until_ready(
        _reference(Rj, Ai, weight, bias, mean, std, w_pos, bias, w_neg, bias))
    out2 = jax.block_until_ready(input_lrp_pallas(
        Rj, Ai, weight, bias, mean, std, w_p=w_pos, b_p=bias, w_n=w_neg, b_n=bias))
    rel2 = float(jnp.linalg.norm(out2 - ref2) / jnp.linalg.norm(ref2))
    assert rel2 < 2e-2, f"z^B-path relative error too large: {rel2}"
    assert bool(jnp.all(jnp.isfinite(out2)))

    print("KERNEL_OK")
</pallas_src>

<mosaic_0001>
module attributes {stable_mosaic.version = 11 : i64} {
  func.func @_input_lrp_kernel(%arg0: i32, %arg1: memref<1x36x512xf32, #tpu.memory_space<vmem>>, %arg2: memref<1x8x512xf32, #tpu.memory_space<vmem>>, %arg3: memref<8x512xf32, #tpu.memory_space<vmem>>, %arg4: memref<8x36xf32, #tpu.memory_space<vmem>>, %arg5: memref<8x72xf32, #tpu.memory_space<vmem>>, %arg6: memref<1x4x384xf32, #tpu.memory_space<vmem>>, %arg7: memref<72x384xf32, #tpu.memory_space<vmem>>) attributes {dimension_semantics = [#tpu.dimension_semantics<parallel>], iteration_bounds = array<i64: 2>, scalar_prefetch = 0 : i64, scratch_operands = 1 : i64, tpu.core_type = #tpu.core_type<tc>, window_params = [{transform_indices = @transform_0, window_bounds = array<i64: 1, 36, 512>}, {transform_indices = @transform_1, window_bounds = array<i64: 1, 8, 512>}, {pipeline_mode = #tpu.pipeline_mode<synchronous>, transform_indices = @transform_2, window_bounds = array<i64: 8, 512>}, {pipeline_mode = #tpu.pipeline_mode<synchronous>, transform_indices = @transform_3, window_bounds = array<i64: 8, 36>}, {pipeline_mode = #tpu.pipeline_mode<synchronous>, transform_indices = @transform_4, window_bounds = array<i64: 8, 72>}, {transform_indices = @transform_5, window_bounds = array<i64: 1, 4, 384>}]} {
    %c0 = arith.constant 0 : index
    %c0_0 = arith.constant 0 : index
    %c0_1 = arith.constant 0 : index
    %0 = vector.load %arg1[%c0, %c0_0, %c0_1] : memref<1x36x512xf32, #tpu.memory_space<vmem>>, vector<1x36x512xf32>
    %1 = vector.shape_cast %0 : vector<1x36x512xf32> to vector<36x512xf32>
    %c0_2 = arith.constant 0 : index
    %c0_3 = arith.constant 0 : index
    %2 = vector.load %arg3[%c0_2, %c0_3] : memref<8x512xf32, #tpu.memory_space<vmem>>, vector<8x512xf32>
    %c0_4 = arith.constant 0 : index
    %c0_5 = arith.constant 0 : index
    %3 = vector.load %arg4[%c0_4, %c0_5] : memref<8x36xf32, #tpu.memory_space<vmem>>, vector<8x36xf32>
    %cst = arith.constant dense<0.000000e+00> : vector<8x512xf32>
    %4 = tpu.matmul %3, %1, %cst {dimension_numbers = #tpu.dot_dimension_numbers<[1], [0], [0], [1], [0, 0, 1, 1], [], []>, precision = #tpu.contract_precision<fp32>} : vector<8x36xf32>, vector<36x512xf32>, vector<8x512xf32> -> vector<8x512xf32>
    %5 = arith.addf %2, %4 : vector<8x512xf32>
    %cst_6 = arith.constant 0.000000e+00 : f32
    %6 = vector.broadcast %cst_6 : f32 to vector<8x512xf32>
    %7 = arith.cmpf oge, %5, %6 : vector<8x512xf32>
    %cst_7 = arith.constant 1.000000e+00 : f32
    %cst_8 = arith.constant -1.000000e+00 : f32
    %8 = vector.broadcast %cst_7 : f32 to vector<8x512xf32>
    %9 = vector.broadcast %cst_8 : f32 to vector<8x512xf32>
    %10 = arith.select %7, %8, %9 : vector<8x512xi1>, vector<8x512xf32>
    %cst_9 = arith.constant 2.500000e-01 : f32
    %11 = vector.broadcast %cst_9 : f32 to vector<8x512xf32>
    %12 = arith.mulf %11, %10 : vector<8x512xf32>
    %13 = arith.addf %5, %12 : vector<8x512xf32>
    %c0_10 = arith.constant 0 : index
    %c0_11 = arith.constant 0 : index
    %c0_12 = arith.constant 0 : index
    %14 = vector.load %arg2[%c0_10, %c0_11, %c0_12] : memref<1x8x512xf32, #tpu.memory_space<vmem>>, vector<1x8x512xf32>
    %15 = vector.shape_cast %14 : vector<1x8x512xf32> to vector<8x512xf32>
    %16 = arith.divf %15, %13 : vector<8x512xf32>
    %17 = vector.extract_strided_slice %16 {offsets = [0, 55], sizes = [8, 384], strides = [1, 1]} : vector<8x512xf32> to vector<8x384xf32>
    %c0_13 = arith.constant 0 : index
    %c0_14 = arith.constant 0 : index
    %18 = vector.load %arg7[%c0_13, %c0_14] : memref<72x384xf32, #tpu.memory_space<vmem>>, vector<8x384xf32>
    tpu.vector_store %arg7[%c0_13, %c0_14], %17 {strides = array<i32>} : memref<72x384xf32, #tpu.memory_space<vmem>>, vector<8x384xf32>,
    %19 = vector.extract_strided_slice %16 {offsets = [0, 54], sizes = [8, 384], strides = [1, 1]} : vector<8x512xf32> to vector<8x384xf32>
    %c8 = arith.constant 8 : index
    %c0_15 = arith.constant 0 : index
    %20 = vector.load %arg7[%c8, %c0_15] : memref<72x384xf32, #tpu.memory_space<vmem>>, vector<8x384xf32>
    tpu.vector_store %arg7[%c8, %c0_15], %19 {strides = array<i32>} : memref<72x384xf32, #tpu.memory_space<vmem>>, vector<8x384xf32>,
    %21 = vector.extract_strided_slice %16 {offsets = [0, 53], sizes = [8, 384], strides = [1, 1]} : vector<8x512xf32> to vector<8x384xf32>
    %c16 = arith.constant 16 : index
    %c0_16 = arith.constant 0 : index
    %22 = vector.load %arg7[%c16, %c0_16] : memref<72x384xf32, #tpu.memory_space<vmem>>, vector<8x384xf32>
    tpu.vector_store %arg7[%c16, %c0_16], %21 {strides = array<i32>} : memref<72x384xf32, #tpu.memory_space<vmem>>, vector<8x384xf32>,
    %23 = vector.extract_strided_slice %16 {offsets = [0, 37], sizes = [8, 384], strides = [1, 1]} : vector<8x512xf32> to vector<8x384xf32>
    %c24 = arith.constant 24 : index
    %c0_17 = arith.constant 0 : index
    %24 = vector.load %arg7[%c24, %c0_17] : memref<72x384xf32, #tpu.memory_space<vmem>>, vector<8x384xf32>
    tpu.vector_store %arg7[%c24, %c0_17], %23 {strides = array<i32>} : memref<72x384xf32, #tpu.memory_space<vmem>>, vector<8x384xf32>,
    %25 = vector.extract_strided_slice %16 {offsets = [0, 36], sizes = [8, 384], strides = [1, 1]} : vector<8x512xf32> to vector<8x384xf32>
    %c32 = arith.constant 32 : index
    %c0_18 = arith.constant 0 : index
    %26 = vector.load %arg7[%c32, %c0_18] : memref<72x384xf32, #tpu.memory_space<vmem>>, vector<8x384xf32>
    tpu.vector_store %arg7[%c32, %c0_18], %25 {strides = array<i32>} : memref<72x384xf32, #tpu.memory_space<vmem>>, vector<8x384xf32>,
    %27 = vector.extract_strided_slice %16 {offsets = [0, 35], sizes = [8, 384], strides = [1, 1]} : vector<8x512xf32> to vector<8x384xf32>
    %c40 = arith.constant 40 : index
    %c0_19 = arith.constant 0 : index
    %28 = vector.load %arg7[%c40, %c0_19] : memref<72x384xf32, #tpu.memory_space<vmem>>, vector<8x384xf32>
    tpu.vector_store %arg7[%c40, %c0_19], %27 {strides = array<i32>} : memref<72x384xf32, #tpu.memory_space<vmem>>, vector<8x384xf32>,
    %29 = vector.extract_strided_slice %16 {offsets = [0, 19], sizes = [8, 384], strides = [1, 1]} : vector<8x512xf32> to vector<8x384xf32>
    %c48 = arith.constant 48 : index
    %c0_20 = arith.constant 0 : index
    %30 = vector.load %arg7[%c48, %c0_20] : memref<72x384xf32, #tpu.memory_space<vmem>>, vector<8x384xf32>
    tpu.vector_store %arg7[%c48, %c0_20], %29 {strides = array<i32>} : memref<72x384xf32, #tpu.memory_space<vmem>>, vector<8x384xf32>,
    %31 = vector.extract_strided_slice %16 {offsets = [0, 18], sizes = [8, 384], strides = [1, 1]} : vector<8x512xf32> to vector<8x384xf32>
    %c56 = arith.constant 56 : index
    %c0_21 = arith.constant 0 : index
    %32 = vector.load %arg7[%c56, %c0_21] : memref<72x384xf32, #tpu.memory_space<vmem>>, vector<8x384xf32>
    tpu.vector_store %arg7[%c56, %c0_21], %31 {strides = array<i32>} : memref<72x384xf32, #tpu.memory_space<vmem>>, vector<8x384xf32>,
    %33 = vector.extract_strided_slice %16 {offsets = [0, 17], sizes = [8, 384], strides = [1, 1]} : vector<8x512xf32> to vector<8x384xf32>
    %c64 = arith.constant 64 : index
    %c0_22 = arith.constant 0 : index
    %34 = vector.load %arg7[%c64, %c0_22] : memref<72x384xf32, #tpu.memory_space<vmem>>, vector<8x384xf32>
    tpu.vector_store %arg7[%c64, %c0_22], %33 {strides = array<i32>} : memref<72x384xf32, #tpu.memory_space<vmem>>, vector<8x384xf32>,
    %c0_23 = arith.constant 0 : index
    %c0_24 = arith.constant 0 : index
    %35 = vector.load %arg5[%c0_23, %c0_24] : memref<8x72xf32, #tpu.memory_space<vmem>>, vector<8x72xf32>
    %c0_25 = arith.constant 0 : index
    %c0_26 = arith.constant 0 : index
    %36 = vector.load %arg7[%c0_25, %c0_26] : memref<72x384xf32, #tpu.memory_space<vmem>>, vector<72x384xf32>
    %cst_27 = arith.constant dense<0.000000e+00> : vector<8x384xf32>
    %37 = tpu.matmul %35, %36, %cst_27 {dimension_numbers = #tpu.dot_dimension_numbers<[1], [0], [0], [1], [0, 0, 1, 1], [], []>, precision = #tpu.contract_precision<fp32>} : vector<8x72xf32>, vector<72x384xf32>, vector<8x384xf32> -> vector<8x384xf32>
    %38 = vector.extract_strided_slice %1 {offsets = [16, 36], sizes = [4, 384], strides = [1, 1]} : vector<36x512xf32> to vector<4x384xf32>
    %39 = vector.extract_strided_slice %37 {offsets = [0, 0], sizes = [4, 384], strides = [1, 1]} : vector<8x384xf32> to vector<4x384xf32>
    %40 = arith.mulf %38, %39 : vector<4x384xf32>
    %41 = vector.extract_strided_slice %37 {offsets = [4, 0], sizes = [4, 384], strides = [1, 1]} : vector<8x384xf32> to vector<4x384xf32>
    %42 = arith.subf %40, %41 : vector<4x384xf32>
    %c0_28 = arith.constant 0 : index
    %c0_29 = arith.constant 0 : index
    %c0_30 = arith.constant 0 : index
    %43 = vector.load %arg6[%c0_28, %c0_29, %c0_30] : memref<1x4x384xf32, #tpu.memory_space<vmem>>, vector<1x4x384xf32>
    %44 = vector.shape_cast %43 : vector<1x4x384xf32> to vector<4x384xf32>
    %45 = vector.shape_cast %42 : vector<4x384xf32> to vector<1x4x384xf32>
    tpu.vector_store %arg6[%c0_28, %c0_29, %c0_30], %45 {strides = array<i32>} : memref<1x4x384xf32, #tpu.memory_space<vmem>>, vector<1x4x384xf32>,
    return
  }
  func.func @transform_0(%arg0: i32) -> (i32, i32, i32) {
    %c0_i32 = arith.constant 0 : i32
    %c0_i32_0 = arith.constant 0 : i32
    %c0_i32_1 = arith.constant 0 : i32
    return %arg0, %c0_i32, %c0_i32_0 : i32, i32, i32
  }
  func.func @transform_1(%arg0: i32) -> (i32, i32, i32) {
    %c0_i32 = arith.constant 0 : i32
    %c0_i32_0 = arith.constant 0 : i32
    %c0_i32_1 = arith.constant 0 : i32
    return %arg0, %c0_i32, %c0_i32_0 : i32, i32, i32
  }
  func.func @transform_2(%arg0: i32) -> (i32, i32) {
    %c0_i32 = arith.constant 0 : i32
    %c0_i32_0 = arith.constant 0 : i32
    %c0_i32_1 = arith.constant 0 : i32
    return %c0_i32, %c0_i32_0 : i32, i32
  }
  func.func @transform_3(%arg0: i32) -> (i32, i32) {
    %c0_i32 = arith.constant 0 : i32
    %c0_i32_0 = arith.constant 0 : i32
    %c0_i32_1 = arith.constant 0 : i32
    return %c0_i32, %c0_i32_0 : i32, i32
  }
  func.func @transform_4(%arg0: i32) -> (i32, i32) {
    %c0_i32 = arith.constant 0 : i32
    %c0_i32_0 = arith.constant 0 : i32
    %c0_i32_1 = arith.constant 0 : i32
    return %c0_i32, %c0_i32_0 : i32, i32
  }
  func.func @transform_5(%arg0: i32) -> (i32, i32, i32) {
    %c0_i32 = arith.constant 0 : i32
    %c0_i32_0 = arith.constant 0 : i32
    %c0_i32_1 = arith.constant 0 : i32
    return %arg0, %c0_i32, %c0_i32_0 : i32, i32, i32
  }
}

</mosaic_0001>

<llo_original>
// kernel: tpu_custom_call.1
$region0: #{tpu_custom_call.1}
  #allocation0 [shape = 'u32[]', space=smem, size = 0x4, offset = 0x4, fixed_abs, tag = 'smem constant byte address 0x4 - core index']
  #allocation1 [shape = 'u32[144,128]{1,0:T(1,128)}', space=vmem, size = 0x12000, scoped, tag = 'internal scratch']
  #allocation2 [shape = 'f32[72,384]{1,0:T(8,128)}', space=vmem, size = 0x1b000, scoped, tag = 'scratch operand']
  %s0 = inlined_call_operand.vmem [shape: f32[2,36,512], index: 0, kind: input, shape index: {}]
  %s1 = inlined_call_operand.vmem [shape: f32[2,8,512], index: 1, kind: input, shape index: {}]
  %s2 = inlined_call_operand.vmem [shape: f32[8,512], index: 2, kind: input, shape index: {}]
  %s3 = inlined_call_operand.vmem [shape: f32[8,36], index: 3, kind: input, shape index: {}]
  %s4 = inlined_call_operand.vmem [shape: f32[8,72], index: 4, kind: input, shape index: {}]
  %s5 = inlined_call_operand.hbm [shape: f32[2,4,384], index: 5, kind: output, shape index: {}]
  %s6 = sld [smem:[#allocation0]]
  $region53: #{tpu_custom_call.1} parent=0
    _
  %s8 = ssub.s32 1, %s6
  %s9 = scalar_select 0, %s8, %s6
  $region1: #{tpu_custom_call.1} parent=0
    #allocation3 [shape = 'u8[12288]{0}', space=vmem, size = 0x3000, scoped, tag = 'output window, operand 0']
    #allocation4 [shape = 's32[2]{0}', space=sflag, size = 0x8, scoped, tag = 'scoped memory for tpu_custom_call.1']
    %10 = vsyncpa [#allocation4], 0
    %s11 = scalar_lea.sflag [#allocation4], 1
    %12 = vsyncpa %s11, 0
    loop: start=0, step=1, limit=4
    $region2: #{tpu_custom_call.1} parent=1 // loop_pre_header
      _
    $region3: #{tpu_custom_call.1} parent=1 // loop_header
      %s14 = sphi 0, %s18
      %p15 = scmp.ge.s32.totalorder %s14, 4
      %s24 = sphi 0, %s26
      %s27 = sphi 0, %s24
      %s28 = sphi 0, %s27
      %s44 = sphi 0, %s28
      %s50 = sphi 0, %s52
      %s53 = sphi 0, %s50
      %s54 = sphi 0, %s53
      %s70 = sphi 0, %s54
      %s74 = sphi 0, %s74
      %s76 = sphi 0, %s74
      %s77 = sphi 0, %s76
      %s91 = sphi 0, %s77
      %s95 = sphi 0, %s95
      %s97 = sphi 0, %s95
      %s98 = sphi 0, %s97
      %s112 = sphi 0, %s98
      %s116 = sphi 0, %s116
      %s118 = sphi 0, %s116
      %s119 = sphi 0, %s118
      %s133 = sphi 0, %s119
      %s139 = sphi 0, %s141
      %s142 = sphi 0, %s139
      %s143 = sphi 0, %s142
      %s159 = sphi 0, %s143
    $region4: #{tpu_custom_call.1} parent=1 // loop_header_branch
      %17 = sbr.rel (%p15) target = $region8
    $region5: #{tpu_custom_call.1} parent=1 // loop_body
      %s19 = ssub.s32 %s14, 1
      %s20 = ssub.s32 %s14, 2
      %s21 = sadd.s32 %s14, 1
      %s22 = ssub.s32 %s14, %s21
      %p23 = scmp.eq.s32.totalorder %s22, 0
      %s25 = sadd.s32 %s24, 1
      %s26 = scalar_select %p23, %s24, %s25
      %p29 = pneg %p23
      %p30 = scmp.eq.s32.totalorder %s14, 1
      %p31 = por %p29, %p30
      %p32 = scmp.ne.s32.totalorder %s24, %s27
      %p33 = scmp.eq.s32.totalorder %s14, 0
      %p34 = por %p32, %p33
      %p35 = scmp.ne.s32.totalorder %s24, %s27
      %p36 = scmp.eq.s32.totalorder %s19, 1
      %p37 = por %p35, %p36
      %p38 = scmp.ne.s32.totalorder %s27, %s28
      %p39 = scmp.eq.s32.totalorder %s19, 0
      %p40 = por %p38, %p39
      %p41 = scmp.ne.s32.totalorder %s27, %s28
      %p42 = scmp.eq.s32.totalorder %s20, 1
      %p43 = por %p41, %p42
      %p45 = scmp.ne.s32.totalorder %s28, %s44
      %p46 = scmp.eq.s32.totalorder %s20, 0
      %p47 = por %p45, %p46
      %s48 = ssub.s32 %s14, %s21
      %p49 = scmp.eq.s32.totalorder %s48, 0
      %s51 = sadd.s32 %s50, 1
      %s52 = scalar_select %p49, %s50, %s51
      %p55 = pneg %p49
      %p56 = scmp.eq.s32.totalorder %s14, 1
      %p57 = por %p55, %p56
      %p58 = scmp.ne.s32.totalorder %s50, %s53
      %p59 = scmp.eq.s32.totalorder %s14, 0
      %p60 = por %p58, %p59
      %p61 = scmp.ne.s32.totalorder %s50, %s53
      %p62 = scmp.eq.s32.totalorder %s19, 1
      %p63 = por %p61, %p62
      %p64 = scmp.ne.s32.totalorder %s53, %s54
      %p65 = scmp.eq.s32.totalorder %s19, 0
      %p66 = por %p64, %p65
      %p67 = scmp.ne.s32.totalorder %s53, %s54
      %p68 = scmp.eq.s32.totalorder %s20, 1
      %p69 = por %p67, %p68
      %p71 = scmp.ne.s32.totalorder %s54, %s70
      %p72 = scmp.eq.s32.totalorder %s20, 0
      %p73 = por %p71, %p72
      %s75 = sadd.s32 %s74, 1
      %p78 = scmp.eq.s32.totalorder %s14, 1
      %p79 = scmp.ne.s32.totalorder %s74, %s76
      %p80 = scmp.eq.s32.totalorder %s14, 0
      %p81 = por %p79, %p80
      %p82 = scmp.ne.s32.totalorder %s74, %s76
      %p83 = scmp.eq.s32.totalorder %s19, 1
      %p84 = por %p82, %p83
      %p85 = scmp.ne.s32.totalorder %s76, %s77
      %p86 = scmp.eq.s32.totalorder %s19, 0
      %p87 = por %p85, %p86
      %p88 = scmp.ne.s32.totalorder %s76, %s77
      %p89 = scmp.eq.s32.totalorder %s20, 1
      %p90 = por %p88, %p89
      %p92 = scmp.ne.s32.totalorder %s77, %s91
      %p93 = scmp.eq.s32.totalorder %s20, 0
      %p94 = por %p92, %p93
      %s96 = sadd.s32 %s95, 1
      %p99 = scmp.eq.s32.totalorder %s14, 1
      %p100 = scmp.ne.s32.totalorder %s95, %s97
      %p101 = scmp.eq.s32.totalorder %s14, 0
      %p102 = por %p100, %p101
      %p103 = scmp.ne.s32.totalorder %s95, %s97
      %p104 = scmp.eq.s32.totalorder %s19, 1
      %p105 = por %p103, %p104
      %p106 = scmp.ne.s32.totalorder %s97, %s98
      %p107 = scmp.eq.s32.totalorder %s19, 0
      %p108 = por %p106, %p107
      %p109 = scmp.ne.s32.totalorder %s97, %s98
      %p110 = scmp.eq.s32.totalorder %s20, 1
      %p111 = por %p109, %p110
      %p113 = scmp.ne.s32.totalorder %s98, %s112
      %p114 = scmp.eq.s32.totalorder %s20, 0
      %p115 = por %p113, %p114
      %s117 = sadd.s32 %s116, 1
      %p120 = scmp.eq.s32.totalorder %s14, 1
      %p121 = scmp.ne.s32.totalorder %s116, %s118
      %p122 = scmp.eq.s32.totalorder %s14, 0
      %p123 = por %p121, %p122
      %p124 = scmp.ne.s32.totalorder %s116, %s118
      %p125 = scmp.eq.s32.totalorder %s19, 1
      %p126 = por %p124, %p125
      %p127 = scmp.ne.s32.totalorder %s118, %s119
      %p128 = scmp.eq.s32.totalorder %s19, 0
      %p129 = por %p127, %p128
      %p130 = scmp.ne.s32.totalorder %s118, %s119
      %p131 = scmp.eq.s32.totalorder %s20, 1
      %p132 = por %p130, %p131
      %p134 = scmp.ne.s32.totalorder %s119, %s133
      %p135 = scmp.eq.s32.totalorder %s20, 0
      %p136 = por %p134, %p135
      %s137 = ssub.s32 %s14, %s21
      %p138 = scmp.eq.s32.totalorder %s137, 0
      %s140 = sadd.s32 %s139, 1
      %s141 = scalar_select %p138, %s139, %s140
      %p144 = pneg %p138
      %p145 = scmp.eq.s32.totalorder %s14, 1
      %p146 = por %p144, %p145
      %p147 = scmp.ne.s32.totalorder %s139, %s142
      %p148 = scmp.eq.s32.totalorder %s14, 0
      %p149 = por %p147, %p148
      %p150 = scmp.ne.s32.totalorder %s139, %s142
      %p151 = scmp.eq.s32.totalorder %s19, 1
      %p152 = por %p150, %p151
      %p153 = scmp.ne.s32.totalorder %s142, %s143
      %p154 = scmp.eq.s32.totalorder %s19, 0
      %p155 = por %p153, %p154
      %p156 = scmp.ne.s32.totalorder %s142, %s143
      %p157 = scmp.eq.s32.totalorder %s20, 1
      %p158 = por %p156, %p157
      %p160 = scmp.ne.s32.totalorder %s143, %s159
      %p161 = scmp.eq.s32.totalorder %s20, 0
      %p162 = por %p160, %p161
      %p163 = scmp.le.s32.totalorder 1, %s14
      %p164 = scmp.lt.s32.totalorder %s14, 3
      %p165 = pnand %p163, %p164
      %p166 = pneg %p165
      // Predicated region
      $region9: #{tpu_custom_call.1} parent=5 // pred_check
        _
      $region10: #{tpu_custom_call.1} parent=5 // pred_check_branch
        %168 = sbr.rel (%p165) target = $region12
      $region11: #{tpu_custom_call.1} parent=5 // pred_region
        %s169 = ssub.s32 %s14, 1
        // Predicated region
        $region13: #{tpu_custom_call.1} parent=11 // pred_check
          %p170 = pneg %p87
        $region14: #{tpu_custom_call.1} parent=11 // pred_check_branch
          %172 = sbr.rel (%p170) target = $region16
        $region15: #{tpu_custom_call.1} parent=11 // pred_region
          _
        $region16: #{tpu_custom_call.1} parent=11 // pred_fallthru
          _
        // Predicated region
        $region17: #{tpu_custom_call.1} parent=11 // pred_check
          %p173 = pneg %p108
        $region18: #{tpu_custom_call.1} parent=11 // pred_check_branch
          %175 = sbr.rel (%p173) target = $region20
        $region19: #{tpu_custom_call.1} parent=11 // pred_region
          _
        $region20: #{tpu_custom_call.1} parent=11 // pred_fallthru
          _
        // Predicated region
        $region21: #{tpu_custom_call.1} parent=11 // pred_check
          %p176 = pneg %p129
        $region22: #{tpu_custom_call.1} parent=11 // pred_check_branch
          %178 = sbr.rel (%p176) target = $region24
        $region23: #{tpu_custom_call.1} parent=11 // pred_region
          _
        $region24: #{tpu_custom_call.1} parent=11 // pred_fallthru
          _
      $region12: #{tpu_custom_call.1} parent=5 // pred_fallthru
        _
      %p179 = scmp.lt.s32.totalorder %s14, 2
      // Predicated region
      $region25: #{tpu_custom_call.1} parent=5 // pred_check
        %p180 = pneg %p179
      $region26: #{tpu_custom_call.1} parent=5 // pred_check_branch
        %182 = sbr.rel (%p180) target = $region28
      $region27: #{tpu_custom_call.1} parent=5 // pred_region
        // Predicated region
        $region29: #{tpu_custom_call.1} parent=27 // pred_check
          %p183 = pneg %p34
        $region30: #{tpu_custom_call.1} parent=27 // pred_check_branch
          %185 = sbr.rel (%p183) target = $region32
        $region31: #{tpu_custom_call.1} parent=27 // pred_region
          %p186 = scmp.lt.s32.totalorder %s14, 1
          %s187 = scalar_select %p186, %s14, 1
          %s188 = smul.addr %s187, 20
          %s189 = smul.addr %s188, 8
          %s190 = scalar_lea.vmem %s0, %s189
        $region32: #{tpu_custom_call.1} parent=27 // pred_fallthru
          _
        // Predicated region
        $region33: #{tpu_custom_call.1} parent=27 // pred_check
          %p191 = pneg %p60
        $region34: #{tpu_custom_call.1} parent=27 // pred_check_branch
          %193 = sbr.rel (%p191) target = $region36
        $region35: #{tpu_custom_call.1} parent=27 // pred_region
          %p194 = scmp.lt.s32.totalorder %s14, 1
          %s195 = scalar_select %p194, %s14, 1
          %s196 = smul.addr %s195, 4
          %s197 = smul.addr %s196, 8
          %s198 = scalar_lea.vmem %s1, %s197
        $region36: #{tpu_custom_call.1} parent=27 // pred_fallthru
          _
      $region28: #{tpu_custom_call.1} parent=5 // pred_fallthru
        _
      %p199 = scmp.le.s32.totalorder 1, %s14
      %p200 = scmp.lt.s32.totalorder %s14, 3
      %p201 = pnand %p199, %p200
      %p202 = pneg %p201
      // Predicated region
      $region37: #{tpu_custom_call.1} parent=5 // pred_check
        _
      $region38: #{tpu_custom_call.1} parent=5 // pred_check_branch
        %204 = sbr.rel (%p201) target = $region40
      $region39: #{tpu_custom_call.1} parent=5 // pred_region
        %s205 = ssub.s32 %s14, 1
        %p206 = scmp.lt.s32.totalorder %s19, 1
        %s207 = scalar_select %p206, %s19, 1
        %s208 = smul.addr %s207, 20
        %s209 = smul.addr %s208, 8
        %s210 = scalar_lea.vmem %s0, %s209
        %p211 = pneg %p40
        %p212 = pneg %p37
        %p213 = scmp.lt.s32.totalorder %s19, 1
        %s214 = scalar_select %p213, %s19, 1
        %s215 = smul.addr %s214, 4
        %s216 = smul.addr %s215, 8
        %s217 = scalar_lea.vmem %s1, %s216
        %p218 = pneg %p66
        %p219 = pneg %p63
        %p220 = pneg %p87
        %p221 = pneg %p84
        %p222 = pneg %p108
        %p223 = pneg %p105
        %p224 = pneg %p129
        %p225 = pneg %p126
        %p226 = pneg %p155
        %p227 = pneg %p152
        %s228 = sand.u32 %s142, 1
        %s229 = scalar_lea.sflag [#allocation4], %s228
        %s230 = sand.u32 %s142, 1
        %s231 = smul.addr %s230, 12
        %s232 = scalar_lea.vmem [#allocation3], %s231
        %p233 = scmp.lt.s32.totalorder %s19, 1
        %s234 = scalar_select %p233, %s19, 1
        %s235 = smul.addr %s234, 20
        %s236 = smul.addr %s235, 8
        %s237 = scalar_lea.vmem %s0, %s236
        %p238 = scmp.lt.s32.totalorder %s19, 1
        %s239 = scalar_select %p238, %s19, 1
        %s240 = smul.addr %s239, 4
        %s241 = smul.addr %s240, 8
        %s242 = scalar_lea.vmem %s1, %s241
        %v243 = vld [vmem:[%s237] sm:$0xff]
        %v244 = vld [vmem:[%s237 + $0x8] sm:$0xff]
        %v245 = vld [vmem:[%s237 + $0x10] sm:$0xff]
        %v246 = vld [vmem:[%s237 + $0x18] sm:$0xff]
        %v247 = vld [vmem:[%s237 + $0x20] sm:$0xff]
        %v248 = vld [vmem:[%s237 + $0x28] sm:$0xff]
        %v249 = vld [vmem:[%s237 + $0x30] sm:$0xff]
        %v250 = vld [vmem:[%s237 + $0x38] sm:$0xff]
        %v251 = vld [vmem:[%s237 + $0x40] sm:$0xff]
        %v252 = vld [vmem:[%s237 + $0x48] sm:$0xff]
        %v253 = vld [vmem:[%s237 + $0x50] sm:$0xff]
        %v254 = vld [vmem:[%s237 + $0x58] sm:$0xff]
        %v255 = vld [vmem:[%s237 + $0x60] sm:$0xff]
        %v256 = vld [vmem:[%s237 + $0x68] sm:$0xff]
        %v257 = vld [vmem:[%s237 + $0x70] sm:$0xff]
        %v258 = vld [vmem:[%s237 + $0x78] sm:$0xff]
        %v259 = vld [vmem:[%s237 + $0x80] sm:$0xf]
        %v260 = vld [vmem:[%s237 + $0x88] sm:$0xf]
        %v261 = vld [vmem:[%s237 + $0x90] sm:$0xf]
        %v262 = vld [vmem:[%s237 + $0x98] sm:$0xf]
        %v263 = vld [vmem:[%s2] sm:$0xff]
        %v264 = vld [vmem:[%s2 + $0x8] sm:$0xff]
        %v265 = vld [vmem:[%s2 + $0x10] sm:$0xff]
        %v266 = vld [vmem:[%s2 + $0x18] sm:$0xff]
        %v267 = vld [vmem:[%s3] sm:$0xff]
        %vm268 = vcmask 293888
        %v270 = vsel %vm268, %v267, 0
        %vm272 = vcmask 1043456
        %v274 = vsel %vm272, %v259, 0
        %v277 = vsel %vm272, %v260, 0
        %v280 = vsel %vm272, %v261, 0
        %v283 = vsel %vm272, %v262, 0
        %v285 = vand.u32 %v244, 4294901760
        %286 = vmatprep.subr.mxu0 %v285
        %v287 = vand.u32 %v243, 4294901760
        %288 = vmatpush1.msra.mxu0 %v287
        %v289 = vand.u32 %v248, 4294901760
        %290 = vmatprep.subr.mxu0 %v289
        %v291 = vand.u32 %v247, 4294901760
        %292 = vmatpush1.msra.mxu0 %v291
        %v293 = vand.u32 %v252, 4294901760
        %294 = vmatprep.subr.mxu0 %v293
        %v295 = vand.u32 %v251, 4294901760
        %296 = vmatpush1.msra.mxu0 %v295
        %v297 = vand.u32 %v256, 4294901760
        %298 = vmatprep.subr.mxu0 %v297
        %v299 = vand.u32 %v255, 4294901760
        %300 = vmatpush1.msra.mxu0 %v299
        %v301 = vand.u32 %v277, 4294901760
        %302 = vmatprep.subr.mxu0 %v301
        %v303 = vand.u32 %v274, 4294901760
        %304 = vmatpush1.msra.mxu0 %v303
        %305 = vmatprep.subr.mxu0 0.0
        %306 = vmatpush1.msra.mxu0 0.0
        %307 = vmatprep.subr.mxu0 0.0
        %308 = vmatpush1.msra.mxu0 0.0
        %309 = vmatprep.subr.mxu0 0.0
        %310 = vmatpush1.msra.mxu0 0.0
        %311 = vmatprep.subr.mxu0 0.0
        %312 = vmatpush1.msra.mxu0 0.0
        %313 = vmatprep.subr.mxu0 0.0
        %314 = vmatpush1.msra.mxu0 0.0
        %315 = vmatprep.subr.mxu0 0.0
        %316 = vmatpush1.msra.mxu0 0.0
        %317 = vmatprep.subr.mxu0 0.0
        %318 = vmatpush1.msra.mxu0 0.0
        %319 = vmatprep.subr.mxu0 0.0
        %320 = vmatpush1.msra.mxu0 0.0
        %321 = vmatprep.subr.mxu0 0.0
        %322 = vmatpush1.msra.mxu0 0.0
        %323 = vmatprep.subr.mxu0 0.0
        %324 = vmatpush1.msra.mxu0 0.0
        %325 = vmatprep.subr.mxu0 0.0
        %326 = vmatpush1.msra.mxu0 0.0
        %327 = vmatprep.subr.mxu0 0.0
        %328 = vmatpush1.msra.mxu0 0.0
        %329 = vmatprep.subr.mxu0 0.0
        %330 = vmatpush1.msra.mxu0 0.0
        %331 = vmatprep.subr.mxu0 0.0
        %332 = vmatpush1.msra.mxu0 0.0
        %333 = vmatprep.subr.mxu0 0.0
        %334 = vmatpush1.msra.mxu0 0.0
        %335 = vmatprep.subr.mxu0 0.0
        %336 = vmatpush1.msra.mxu0 0.0
        %337 = vmatprep.subr.mxu0 0.0
        %338 = vmatpush1.msra.mxu0 0.0
        %339 = vmatprep.subr.mxu0 0.0
        %340 = vmatpush1.msra.mxu0 0.0
        %341 = vmatprep.subr.mxu0 0.0
        %342 = vmatpush1.msra.mxu0 0.0
        %343 = vmatprep.subr.mxu0 0.0
        %344 = vmatpush1.msra.mxu0 0.0
        %345 = vmatprep.subr.mxu0 0.0
        %346 = vmatpush1.msra.mxu0 0.0
        %347 = vmatprep.subr.mxu0 0.0
        %348 = vmatpush1.msra.mxu0 0.0
        %349 = vmatprep.subr.mxu0 0.0
        %350 = vmatpush1.msra.mxu0 0.0
        %351 = vmatprep.subr.mxu0 0.0
        %352 = vmatpush1.msra.mxu0 0.0
        %353 = vmatprep.subr.mxu0 0.0
        %354 = vmatpush1.msra.mxu0 0.0
        %355 = vmatprep.subr.mxu0 0.0
        %356 = vmatpush1.msra.mxu0 0.0
        %357 = vmatprep.subr.mxu0 0.0
        %358 = vmatpush1.msra.mxu0 0.0
        %359 = vmatprep.mubr.f32.mxu0 0.0
        %v360 = vand.u32 %v270, 4294901760
        %v361 = vsub.f32 %v270, %v360
        %v362 = vand.u32 %v361, 4294901760
        %v363 = vsub.f32 %v361, %v362
        %v364 = vand.u32 %v363, 4294901760
        %365 = vmatmul.mubr.f32.gmra.mrb[0].mxu0 %v364
        %v366 = vpop.f32.mrb[0].mxu0
        %v367 = vadd.f32 0.0, %v366
        %v368 = vpop.f32.mrb[0].mxu0
        %v369 = vadd.f32 0.0, %v368
        %370 = vdwg.mxu0
        %v371 = vand.u32 %v244, 4294901760
        %v372 = vsub.f32 %v244, %v371
        %v373 = vand.u32 %v372, 4294901760
        %v374 = vsub.f32 %v372, %v373
        %v375 = vand.u32 %v374, 4294901760
        %376 = vmatprep.subr.mxu0 %v375
        %v377 = vand.u32 %v243, 4294901760
        %v378 = vsub.f32 %v243, %v377
        %v379 = vand.u32 %v378, 4294901760
        %v380 = vsub.f32 %v378, %v379
        %v381 = vand.u32 %v380, 4294901760
        %382 = vmatpush1.msra.mxu0 %v381
        %v383 = vand.u32 %v248, 4294901760
        %v384 = vsub.f32 %v248, %v383
        %v385 = vand.u32 %v384, 4294901760
        %v386 = vsub.f32 %v384, %v385
        %v387 = vand.u32 %v386, 4294901760
        %388 = vmatprep.subr.mxu0 %v387
        %v389 = vand.u32 %v247, 4294901760
        %v390 = vsub.f32 %v247, %v389
        %v391 = vand.u32 %v390, 4294901760
        %v392 = vsub.f32 %v390, %v391
        %v393 = vand.u32 %v392, 4294901760
        %394 = vmatpush1.msra.mxu0 %v393
        %v395 = vand.u32 %v252, 4294901760
        %v396 = vsub.f32 %v252, %v395
        %v397 = vand.u32 %v396, 4294901760
        %v398 = vsub.f32 %v396, %v397
        %v399 = vand.u32 %v398, 4294901760
        %400 = vmatprep.subr.mxu0 %v399
        %v401 = vand.u32 %v251, 4294901760
        %v402 = vsub.f32 %v251, %v401
        %v403 = vand.u32 %v402, 4294901760
        %v404 = vsub.f32 %v402, %v403
        %v405 = vand.u32 %v404, 4294901760
        %406 = vmatpush1.msra.mxu0 %v405
        %v407 = vand.u32 %v256, 4294901760
        %v408 = vsub.f32 %v256, %v407
        %v409 = vand.u32 %v408, 4294901760
        %v410 = vsub.f32 %v408, %v409
        %v411 = vand.u32 %v410, 4294901760
        %412 = vmatprep.subr.mxu0 %v411
        %v413 = vand.u32 %v255, 4294901760
        %v414 = vsub.f32 %v255, %v413
        %v415 = vand.u32 %v414, 4294901760
        %v416 = vsub.f32 %v414, %v415
        %v417 = vand.u32 %v416, 4294901760
        %418 = vmatpush1.msra.mxu0 %v417
        %v419 = vand.u32 %v277, 4294901760
        %v420 = vsub.f32 %v277, %v419
        %v421 = vand.u32 %v420, 4294901760
        %v422 = vsub.f32 %v420, %v421
        %v423 = vand.u32 %v422, 4294901760
        %424 = vmatprep.subr.mxu0 %v423
        %v425 = vand.u32 %v274, 4294901760
        %v426 = vsub.f32 %v274, %v425
        %v427 = vand.u32 %v426, 4294901760
        %v428 = vsub.f32 %v426, %v427
        %v429 = vand.u32 %v428, 4294901760
        %430 = vmatpush1.msra.mxu0 %v429
        %431 = vmatprep.subr.mxu0 0.0
        %432 = vmatpush1.msra.mxu0 0.0
        %433 = vmatprep.subr.mxu0 0.0
        %434 = vmatpush1.msra.mxu0 0.0
        %435 = vmatprep.subr.mxu0 0.0
        %436 = vmatpush1.msra.mxu0 0.0
        %437 = vmatprep.subr.mxu0 0.0
        %438 = vmatpush1.msra.mxu0 0.0
        %439 = vmatprep.subr.mxu0 0.0
        %440 = vmatpush1.msra.mxu0 0.0
        %441 = vmatprep.subr.mxu0 0.0
        %442 = vmatpush1.msra.mxu0 0.0
        %443 = vmatprep.subr.mxu0 0.0
        %444 = vmatpush1.msra.mxu0 0.0
        %445 = vmatprep.subr.mxu0 0.0
        %446 = vmatpush1.msra.mxu0 0.0
        %447 = vmatprep.subr.mxu0 0.0
        %448 = vmatpush1.msra.mxu0 0.0
        %449 = vmatprep.subr.mxu0 0.0
        %450 = vmatpush1.msra.mxu0 0.0
        %451 = vmatprep.subr.mxu0 0.0
        %452 = vmatpush1.msra.mxu0 0.0
        %453 = vmatprep.subr.mxu0 0.0
        %454 = vmatpush1.msra.mxu0 0.0
        %455 = vmatprep.subr.mxu0 0.0
        %456 = vmatpush1.msra.mxu0 0.0
        %457 = vmatprep.subr.mxu0 0.0
        %458 = vmatpush1.msra.mxu0 0.0
        %459 = vmatprep.subr.mxu0 0.0
        %460 = vmatpush1.msra.mxu0 0.0
        %461 = vmatprep.subr.mxu0 0.0
        %462 = vmatpush1.msra.mxu0 0.0
        %463 = vmatprep.subr.mxu0 0.0
        %464 = vmatpush1.msra.mxu0 0.0
        %465 = vmatprep.subr.mxu0 0.0
        %466 = vmatpush1.msra.mxu0 0.0
        %467 = vmatprep.subr.mxu0 0.0
        %468 = vmatpush1.msra.mxu0 0.0
        %469 = vmatprep.subr.mxu0 0.0
        %470 = vmatpush1.msra.mxu0 0.0
        %471 = vmatprep.subr.mxu0 0.0
        %472 = vmatpush1.msra.mxu0 0.0
        %473 = vmatprep.subr.mxu0 0.0
        %474 = vmatpush1.msra.mxu0 0.0
        %475 = vmatprep.subr.mxu0 0.0
        %476 = vmatpush1.msra.mxu0 0.0
        %477 = vmatprep.subr.mxu0 0.0
        %478 = vmatpush1.msra.mxu0 0.0
        %479 = vmatprep.subr.mxu0 0.0
        %480 = vmatpush1.msra.mxu0 0.0
        %481 = vmatprep.subr.mxu0 0.0
        %482 = vmatpush1.msra.mxu0 0.0
        %483 = vmatprep.subr.mxu0 0.0
        %484 = vmatpush1.msra.mxu0 0.0
        %485 = vmatprep.mubr.f32.mxu0 0.0
        %v486 = vand.u32 %v270, 4294901760
        %487 = vmatmul.mubr.f32.gmra.mrb[0].mxu0 %v486
        %v488 = vpop.f32.mrb[0].mxu0
        %v489 = vadd.f32 %v367, %v488
        %v490 = vpop.f32.mrb[0].mxu0
        %v491 = vadd.f32 %v369, %v490
        %492 = vdwg.mxu0
        %v493 = vand.u32 %v244, 4294901760
        %v494 = vsub.f32 %v244, %v493
        %495 = vmatprep.subr.mxu0 %v494
        %v496 = vand.u32 %v243, 4294901760
        %v497 = vsub.f32 %v243, %v496
        %498 = vmatpush1.msra.mxu0 %v497
        %v499 = vand.u32 %v248, 4294901760
        %v500 = vsub.f32 %v248, %v499
        %501 = vmatprep.subr.mxu0 %v500
        %v502 = vand.u32 %v247, 4294901760
        %v503 = vsub.f32 %v247, %v502
        %504 = vmatpush1.msra.mxu0 %v503
        %v505 = vand.u32 %v252, 4294901760
        %v506 = vsub.f32 %v252, %v505
        %507 = vmatprep.subr.mxu0 %v506
        %v508 = vand.u32 %v251, 4294901760
        %v509 = vsub.f32 %v251, %v508
        %510 = vmatpush1.msra.mxu0 %v509
        %v511 = vand.u32 %v256, 4294901760
        %v512 = vsub.f32 %v256, %v511
        %513 = vmatprep.subr.mxu0 %v512
        %v514 = vand.u32 %v255, 4294901760
        %v515 = vsub.f32 %v255, %v514
        %516 = vmatpush1.msra.mxu0 %v515
        %v517 = vand.u32 %v277, 4294901760
        %v518 = vsub.f32 %v277, %v517
        %519 = vmatprep.subr.mxu0 %v518
        %v520 = vand.u32 %v274, 4294901760
        %v521 = vsub.f32 %v274, %v520
        %522 = vmatpush1.msra.mxu0 %v521
        %523 = vmatprep.subr.mxu0 0.0
        %524 = vmatpush1.msra.mxu0 0.0
        %525 = vmatprep.subr.mxu0 0.0
        %526 = vmatpush1.msra.mxu0 0.0
        %527 = vmatprep.subr.mxu0 0.0
        %528 = vmatpush1.msra.mxu0 0.0
        %529 = vmatprep.subr.mxu0 0.0
        %530 = vmatpush1.msra.mxu0 0.0
        %531 = vmatprep.subr.mxu0 0.0
        %532 = vmatpush1.msra.mxu0 0.0
        %533 = vmatprep.subr.mxu0 0.0
        %534 = vmatpush1.msra.mxu0 0.0
        %535 = vmatprep.subr.mxu0 0.0
        %536 = vmatpush1.msra.mxu0 0.0
        %537 = vmatprep.subr.mxu0 0.0
        %538 = vmatpush1.msra.mxu0 0.0
        %539 = vmatprep.subr.mxu0 0.0
        %540 = vmatpush1.msra.mxu0 0.0
        %541 = vmatprep.subr.mxu0 0.0
        %542 = vmatpush1.msra.mxu0 0.0
        %543 = vmatprep.subr.mxu0 0.0
        %544 = vmatpush1.msra.mxu0 0.0
        %545 = vmatprep.subr.mxu0 0.0
        %546 = vmatpush1.msra.mxu0 0.0
        %547 = vmatprep.subr.mxu0 0.0
        %548 = vmatpush1.msra.mxu0 0.0
        %549 = vmatprep.subr.mxu0 0.0
        %550 = vmatpush1.msra.mxu0 0.0
        %551 = vmatprep.subr.mxu0 0.0
        %552 = vmatpush1.msra.mxu0 0.0
        %553 = vmatprep.subr.mxu0 0.0
        %554 = vmatpush1.msra.mxu0 0.0
        %555 = vmatprep.subr.mxu0 0.0
        %556 = vmatpush1.msra.mxu0 0.0
        %557 = vmatprep.subr.mxu0 0.0
        %558 = vmatpush1.msra.mxu0 0.0
        %559 = vmatprep.subr.mxu0 0.0
        %560 = vmatpush1.msra.mxu0 0.0
        %561 = vmatprep.subr.mxu0 0.0
        %562 = vmatpush1.msra.mxu0 0.0
        %563 = vmatprep.subr.mxu0 0.0
        %564 = vmatpush1.msra.mxu0 0.0
        %565 = vmatprep.subr.mxu0 0.0
        %566 = vmatpush1.msra.mxu0 0.0
        %567 = vmatprep.subr.mxu0 0.0
        %568 = vmatpush1.msra.mxu0 0.0
        %569 = vmatprep.subr.mxu0 0.0
        %570 = vmatpush1.msra.mxu0 0.0
        %571 = vmatprep.subr.mxu0 0.0
        %572 = vmatpush1.msra.mxu0 0.0
        %573 = vmatprep.subr.mxu0 0.0
        %574 = vmatpush1.msra.mxu0 0.0
        %575 = vmatprep.subr.mxu0 0.0
        %576 = vmatpush1.msra.mxu0 0.0
        %577 = vmatprep.mubr.f32.mxu0 0.0
        %v578 = vand.u32 %v270, 4294901760
        %v579 = vsub.f32 %v270, %v578
        %580 = vmatmul.mubr.f32.gmra.mrb[0].mxu0 %v579
        %v581 = vpop.f32.mrb[0].mxu0
        %v582 = vadd.f32 %v489, %v581
        %v583 = vpop.f32.mrb[0].mxu0
        %v584 = vadd.f32 %v491, %v583
        %585 = vdwg.mxu0
        %v586 = vand.u32 %v244, 4294901760
        %587 = vmatprep.subr.mxu0 %v586
        %v588 = vand.u32 %v243, 4294901760
        %589 = vmatpush1.msra.mxu0 %v588
        %v590 = vand.u32 %v248, 4294901760
        %591 = vmatprep.subr.mxu0 %v590
        %v592 = vand.u32 %v247, 4294901760
        %593 = vmatpush1.msra.mxu0 %v592
        %v594 = vand.u32 %v252, 4294901760
        %595 = vmatprep.subr.mxu0 %v594
        %v596 = vand.u32 %v251, 4294901760
        %597 = vmatpush1.msra.mxu0 %v596
        %v598 = vand.u32 %v256, 4294901760
        %599 = vmatprep.subr.mxu0 %v598
        %v600 = vand.u32 %v255, 4294901760
        %601 = vmatpush1.msra.mxu0 %v600
        %v602 = vand.u32 %v277, 4294901760
        %603 = vmatprep.subr.mxu0 %v602
        %v604 = vand.u32 %v274, 4294901760
        %605 = vmatpush1.msra.mxu0 %v604
        %606 = vmatprep.subr.mxu0 0.0
        %607 = vmatpush1.msra.mxu0 0.0
        %608 = vmatprep.subr.mxu0 0.0
        %609 = vmatpush1.msra.mxu0 0.0
        %610 = vmatprep.subr.mxu0 0.0
        %611 = vmatpush1.msra.mxu0 0.0
        %612 = vmatprep.subr.mxu0 0.0
        %613 = vmatpush1.msra.mxu0 0.0
        %614 = vmatprep.subr.mxu0 0.0
        %615 = vmatpush1.msra.mxu0 0.0
        %616 = vmatprep.subr.mxu0 0.0
        %617 = vmatpush1.msra.mxu0 0.0
        %618 = vmatprep.subr.mxu0 0.0
        %619 = vmatpush1.msra.mxu0 0.0
        %620 = vmatprep.subr.mxu0 0.0
        %621 = vmatpush1.msra.mxu0 0.0
        %622 = vmatprep.subr.mxu0 0.0
        %623 = vmatpush1.msra.mxu0 0.0
        %624 = vmatprep.subr.mxu0 0.0
        %625 = vmatpush1.msra.mxu0 0.0
        %626 = vmatprep.subr.mxu0 0.0
        %627 = vmatpush1.msra.mxu0 0.0
        %628 = vmatprep.subr.mxu0 0.0
        %629 = vmatpush1.msra.mxu0 0.0
        %630 = vmatprep.subr.mxu0 0.0
        %631 = vmatpush1.msra.mxu0 0.0
        %632 = vmatprep.subr.mxu0 0.0
        %633 = vmatpush1.msra.mxu0 0.0
        %634 = vmatprep.subr.mxu0 0.0
        %635 = vmatpush1.msra.mxu0 0.0
        %636 = vmatprep.subr.mxu0 0.0
        %637 = vmatpush1.msra.mxu0 0.0
        %638 = vmatprep.subr.mxu0 0.0
        %639 = vmatpush1.msra.mxu0 0.0
        %640 = vmatprep.subr.mxu0 0.0
        %641 = vmatpush1.msra.mxu0 0.0
        %642 = vmatprep.subr.mxu0 0.0
        %643 = vmatpush1.msra.mxu0 0.0
        %644 = vmatprep.subr.mxu0 0.0
        %645 = vmatpush1.msra.mxu0 0.0
        %646 = vmatprep.subr.mxu0 0.0
        %647 = vmatpush1.msra.mxu0 0.0
        %648 = vmatprep.subr.mxu0 0.0
        %649 = vmatpush1.msra.mxu0 0.0
        %650 = vmatprep.subr.mxu0 0.0
        %651 = vmatpush1.msra.mxu0 0.0
        %652 = vmatprep.subr.mxu0 0.0
        %653 = vmatpush1.msra.mxu0 0.0
        %654 = vmatprep.subr.mxu0 0.0
        %655 = vmatpush1.msra.mxu0 0.0
        %656 = vmatprep.subr.mxu0 0.0
        %657 = vmatpush1.msra.mxu0 0.0
        %658 = vmatprep.subr.mxu0 0.0
        %659 = vmatpush1.msra.mxu0 0.0
        %660 = vmatprep.mubr.f32.mxu0 0.0
        %v661 = vand.u32 %v270, 4294901760
        %v662 = vsub.f32 %v270, %v661
        %v663 = vand.u32 %v662, 4294901760
        %664 = vmatmul.mubr.f32.gmra.mrb[0].mxu0 %v663
        %v665 = vpop.f32.mrb[0].mxu0
        %v666 = vadd.f32 %v582, %v665
        %v667 = vpop.f32.mrb[0].mxu0
        %v668 = vadd.f32 %v584, %v667
        %669 = vdwg.mxu0
        %v670 = vand.u32 %v244, 4294901760
        %v671 = vsub.f32 %v244, %v670
        %v672 = vand.u32 %v671, 4294901760
        %673 = vmatprep.subr.mxu0 %v672
        %v674 = vand.u32 %v243, 4294901760
        %v675 = vsub.f32 %v243, %v674
        %v676 = vand.u32 %v675, 4294901760
        %677 = vmatpush1.msra.mxu0 %v676
        %v678 = vand.u32 %v248, 4294901760
        %v679 = vsub.f32 %v248, %v678
        %v680 = vand.u32 %v679, 4294901760
        %681 = vmatprep.subr.mxu0 %v680
        %v682 = vand.u32 %v247, 4294901760
        %v683 = vsub.f32 %v247, %v682
        %v684 = vand.u32 %v683, 4294901760
        %685 = vmatpush1.msra.mxu0 %v684
        %v686 = vand.u32 %v252, 4294901760
        %v687 = vsub.f32 %v252, %v686
        %v688 = vand.u32 %v687, 4294901760
        %689 = vmatprep.subr.mxu0 %v688
        %v690 = vand.u32 %v251, 4294901760
        %v691 = vsub.f32 %v251, %v690
        %v692 = vand.u32 %v691, 4294901760
        %693 = vmatpush1.msra.mxu0 %v692
        %v694 = vand.u32 %v256, 4294901760
        %v695 = vsub.f32 %v256, %v694
        %v696 = vand.u32 %v695, 4294901760
        %697 = vmatprep.subr.mxu0 %v696
        %v698 = vand.u32 %v255, 4294901760
        %v699 = vsub.f32 %v255, %v698
        %v700 = vand.u32 %v699, 4294901760
        %701 = vmatpush1.msra.mxu0 %v700
        %v702 = vand.u32 %v277, 4294901760
        %v703 = vsub.f32 %v277, %v702
        %v704 = vand.u32 %v703, 4294901760
        %705 = vmatprep.subr.mxu0 %v704
        %v706 = vand.u32 %v274, 4294901760
        %v707 = vsub.f32 %v274, %v706
        %v708 = vand.u32 %v707, 4294901760
        %709 = vmatpush1.msra.mxu0 %v708
        %710 = vmatprep.subr.mxu0 0.0
        %711 = vmatpush1.msra.mxu0 0.0
        %712 = vmatprep.subr.mxu0 0.0
        %713 = vmatpush1.msra.mxu0 0.0
        %714 = vmatprep.subr.mxu0 0.0
        %715 = vmatpush1.msra.mxu0 0.0
        %716 = vmatprep.subr.mxu0 0.0
        %717 = vmatpush1.msra.mxu0 0.0
        %718 = vmatprep.subr.mxu0 0.0
        %719 = vmatpush1.msra.mxu0 0.0
        %720 = vmatprep.subr.mxu0 0.0
        %721 = vmatpush1.msra.mxu0 0.0
        %722 = vmatprep.subr.mxu0 0.0
        %723 = vmatpush1.msra.mxu0 0.0
        %724 = vmatprep.subr.mxu0 0.0
        %725 = vmatpush1.msra.mxu0 0.0
        %726 = vmatprep.subr.mxu0 0.0
        %727 = vmatpush1.msra.mxu0 0.0
        %728 = vmatprep.subr.mxu0 0.0
        %729 = vmatpush1.msra.mxu0 0.0
        %730 = vmatprep.subr.mxu0 0.0
        %731 = vmatpush1.msra.mxu0 0.0
        %732 = vmatprep.subr.mxu0 0.0
        %733 = vmatpush1.msra.mxu0 0.0
        %734 = vmatprep.subr.mxu0 0.0
        %735 = vmatpush1.msra.mxu0 0.0
        %736 = vmatprep.subr.mxu0 0.0
        %737 = vmatpush1.msra.mxu0 0.0
        %738 = vmatprep.subr.mxu0 0.0
        %739 = vmatpush1.msra.mxu0 0.0
        %740 = vmatprep.subr.mxu0 0.0
        %741 = vmatpush1.msra.mxu0 0.0
        %742 = vmatprep.subr.mxu0 0.0
        %743 = vmatpush1.msra.mxu0 0.0
        %744 = vmatprep.subr.mxu0 0.0
        %745 = vmatpush1.msra.mxu0 0.0
        %746 = vmatprep.subr.mxu0 0.0
        %747 = vmatpush1.msra.mxu0 0.0
        %748 = vmatprep.subr.mxu0 0.0
        %749 = vmatpush1.msra.mxu0 0.0
        %750 = vmatprep.subr.mxu0 0.0
        %751 = vmatpush1.msra.mxu0 0.0
        %752 = vmatprep.subr.mxu0 0.0
        %753 = vmatpush1.msra.mxu0 0.0
        %754 = vmatprep.subr.mxu0 0.0
        %755 = vmatpush1.msra.mxu0 0.0
        %756 = vmatprep.subr.mxu0 0.0
        %757 = vmatpush1.msra.mxu0 0.0
        %758 = vmatprep.subr.mxu0 0.0
        %759 = vmatpush1.msra.mxu0 0.0
        %760 = vmatprep.subr.mxu0 0.0
        %761 = vmatpush1.msra.mxu0 0.0
        %762 = vmatprep.subr.mxu0 0.0
        %763 = vmatpush1.msra.mxu0 0.0
        %764 = vmatprep.mubr.f32.mxu0 0.0
        %v765 = vand.u32 %v270, 4294901760
        %766 = vmatmul.mubr.f32.gmra.mrb[0].mxu0 %v765
        %v767 = vpop.f32.mrb[0].mxu0
        %v768 = vadd.f32 %v666, %v767
        %v769 = vpop.f32.mrb[0].mxu0
        %v770 = vadd.f32 %v668, %v769
        %771 = vdwg.mxu0
        %v772 = vand.u32 %v244, 4294901760
        %773 = vmatprep.subr.mxu0 %v772
        %v774 = vand.u32 %v243, 4294901760
        %775 = vmatpush1.msra.mxu0 %v774
        %v776 = vand.u32 %v248, 4294901760
        %777 = vmatprep.subr.mxu0 %v776
        %v778 = vand.u32 %v247, 4294901760
        %779 = vmatpush1.msra.mxu0 %v778
        %v780 = vand.u32 %v252, 4294901760
        %781 = vmatprep.subr.mxu0 %v780
        %v782 = vand.u32 %v251, 4294901760
        %783 = vmatpush1.msra.mxu0 %v782
        %v784 = vand.u32 %v256, 4294901760
        %785 = vmatprep.subr.mxu0 %v784
        %v786 = vand.u32 %v255, 4294901760
        %787 = vmatpush1.msra.mxu0 %v786
        %v788 = vand.u32 %v277, 4294901760
        %789 = vmatprep.subr.mxu0 %v788
        %v790 = vand.u32 %v274, 4294901760
        %791 = vmatpush1.msra.mxu0 %v790
        %792 = vmatprep.subr.mxu0 0.0
        %793 = vmatpush1.msra.mxu0 0.0
        %794 = vmatprep.subr.mxu0 0.0
        %795 = vmatpush1.msra.mxu0 0.0
        %796 = vmatprep.subr.mxu0 0.0
        %797 = vmatpush1.msra.mxu0 0.0
        %798 = vmatprep.subr.mxu0 0.0
        %799 = vmatpush1.msra.mxu0 0.0
        %800 = vmatprep.subr.mxu0 0.0
        %801 = vmatpush1.msra.mxu0 0.0
        %802 = vmatprep.subr.mxu0 0.0
        %803 = vmatpush1.msra.mxu0 0.0
        %804 = vmatprep.subr.mxu0 0.0
        %805 = vmatpush1.msra.mxu0 0.0
        %806 = vmatprep.subr.mxu0 0.0
        %807 = vmatpush1.msra.mxu0 0.0
        %808 = vmatprep.subr.mxu0 0.0
        %809 = vmatpush1.msra.mxu0 0.0
        %810 = vmatprep.subr.mxu0 0.0
        %811 = vmatpush1.msra.mxu0 0.0
        %812 = vmatprep.subr.mxu0 0.0
        %813 = vmatpush1.msra.mxu0 0.0
        %814 = vmatprep.subr.mxu0 0.0
        %815 = vmatpush1.msra.mxu0 0.0
        %816 = vmatprep.subr.mxu0 0.0
        %817 = vmatpush1.msra.mxu0 0.0
        %818 = vmatprep.subr.mxu0 0.0
        %819 = vmatpush1.msra.mxu0 0.0
        %820 = vmatprep.subr.mxu0 0.0
        %821 = vmatpush1.msra.mxu0 0.0
        %822 = vmatprep.subr.mxu0 0.0
        %823 = vmatpush1.msra.mxu0 0.0
        %824 = vmatprep.subr.mxu0 0.0
        %825 = vmatpush1.msra.mxu0 0.0
        %826 = vmatprep.subr.mxu0 0.0
        %827 = vmatpush1.msra.mxu0 0.0
        %828 = vmatprep.subr.mxu0 0.0
        %829 = vmatpush1.msra.mxu0 0.0
        %830 = vmatprep.subr.mxu0 0.0
        %831 = vmatpush1.msra.mxu0 0.0
        %832 = vmatprep.subr.mxu0 0.0
        %833 = vmatpush1.msra.mxu0 0.0
        %834 = vmatprep.subr.mxu0 0.0
        %835 = vmatpush1.msra.mxu0 0.0
        %836 = vmatprep.subr.mxu0 0.0
        %837 = vmatpush1.msra.mxu0 0.0
        %838 = vmatprep.subr.mxu0 0.0
        %839 = vmatpush1.msra.mxu0 0.0
        %840 = vmatprep.subr.mxu0 0.0
        %841 = vmatpush1.msra.mxu0 0.0
        %842 = vmatprep.subr.mxu0 0.0
        %843 = vmatpush1.msra.mxu0 0.0
        %844 = vmatprep.subr.mxu0 0.0
        %845 = vmatpush1.msra.mxu0 0.0
        %846 = vmatprep.mubr.f32.mxu0 0.0
        %v847 = vand.u32 %v270, 4294901760
        %848 = vmatmul.mubr.f32.gmra.mrb[0].mxu0 %v847
        %v849 = vpop.f32.mrb[0].mxu0
        %v850 = vadd.f32 %v768, %v849
        %v851 = vpop.f32.mrb[0].mxu0
        %v852 = vadd.f32 %v770, %v851
        %853 = vdwg.mxu0
        %v854 = vand.u32 %v246, 4294901760
        %855 = vmatprep.subr.mxu0 %v854
        %v856 = vand.u32 %v245, 4294901760
        %857 = vmatpush1.msra.mxu0 %v856
        %v858 = vand.u32 %v250, 4294901760
        %859 = vmatprep.subr.mxu0 %v858
        %v860 = vand.u32 %v249, 4294901760
        %861 = vmatpush1.msra.mxu0 %v860
        %v862 = vand.u32 %v254, 4294901760
        %863 = vmatprep.subr.mxu0 %v862
        %v864 = vand.u32 %v253, 4294901760
        %865 = vmatpush1.msra.mxu0 %v864
        %v866 = vand.u32 %v258, 4294901760
        %867 = vmatprep.subr.mxu0 %v866
        %v868 = vand.u32 %v257, 4294901760
        %869 = vmatpush1.msra.mxu0 %v868
        %v870 = vand.u32 %v283, 4294901760
        %871 = vmatprep.subr.mxu0 %v870
        %v872 = vand.u32 %v280, 4294901760
        %873 = vmatpush1.msra.mxu0 %v872
        %874 = vmatprep.subr.mxu0 0.0
        %875 = vmatpush1.msra.mxu0 0.0
        %876 = vmatprep.subr.mxu0 0.0
        %877 = vmatpush1.msra.mxu0 0.0
        %878 = vmatprep.subr.mxu0 0.0
        %879 = vmatpush1.msra.mxu0 0.0
        %880 = vmatprep.subr.mxu0 0.0
        %881 = vmatpush1.msra.mxu0 0.0
        %882 = vmatprep.subr.mxu0 0.0
        %883 = vmatpush1.msra.mxu0 0.0
        %884 = vmatprep.subr.mxu0 0.0
        %885 = vmatpush1.msra.mxu0 0.0
        %886 = vmatprep.subr.mxu0 0.0
        %887 = vmatpush1.msra.mxu0 0.0
        %888 = vmatprep.subr.mxu0 0.0
        %889 = vmatpush1.msra.mxu0 0.0
        %890 = vmatprep.subr.mxu0 0.0
        %891 = vmatpush1.msra.mxu0 0.0
        %892 = vmatprep.subr.mxu0 0.0
        %893 = vmatpush1.msra.mxu0 0.0
        %894 = vmatprep.subr.mxu0 0.0
        %895 = vmatpush1.msra.mxu0 0.0
        %896 = vmatprep.subr.mxu0 0.0
        %897 = vmatpush1.msra.mxu0 0.0
        %898 = vmatprep.subr.mxu0 0.0
        %899 = vmatpush1.msra.mxu0 0.0
        %900 = vmatprep.subr.mxu0 0.0
        %901 = vmatpush1.msra.mxu0 0.0
        %902 = vmatprep.subr.mxu0 0.0
        %903 = vmatpush1.msra.mxu0 0.0
        %904 = vmatprep.subr.mxu0 0.0
        %905 = vmatpush1.msra.mxu0 0.0
        %906 = vmatprep.subr.mxu0 0.0
        %907 = vmatpush1.msra.mxu0 0.0
        %908 = vmatprep.subr.mxu0 0.0
        %909 = vmatpush1.msra.mxu0 0.0
        %910 = vmatprep.subr.mxu0 0.0
        %911 = vmatpush1.msra.mxu0 0.0
        %912 = vmatprep.subr.mxu0 0.0
        %913 = vmatpush1.msra.mxu0 0.0
        %914 = vmatprep.subr.mxu0 0.0
        %915 = vmatpush1.msra.mxu0 0.0
        %916 = vmatprep.subr.mxu0 0.0
        %917 = vmatpush1.msra.mxu0 0.0
        %918 = vmatprep.subr.mxu0 0.0
        %919 = vmatpush1.msra.mxu0 0.0
        %920 = vmatprep.subr.mxu0 0.0
        %921 = vmatpush1.msra.mxu0 0.0
        %922 = vmatprep.subr.mxu0 0.0
        %923 = vmatpush1.msra.mxu0 0.0
        %924 = vmatprep.subr.mxu0 0.0
        %925 = vmatpush1.msra.mxu0 0.0
        %926 = vmatprep.subr.mxu0 0.0
        %927 = vmatpush1.msra.mxu0 0.0
        %928 = vmatprep.mubr.f32.mxu0 0.0
        %v929 = vand.u32 %v270, 4294901760
        %v930 = vsub.f32 %v270, %v929
        %v931 = vand.u32 %v930, 4294901760
        %v932 = vsub.f32 %v930, %v931
        %v933 = vand.u32 %v932, 4294901760
        %934 = vmatmul.mubr.f32.gmra.mrb[0].mxu0 %v933
        %v935 = vpop.f32.mrb[0].mxu0
        %v936 = vadd.f32 0.0, %v935
        %v937 = vpop.f32.mrb[0].mxu0
        %v938 = vadd.f32 0.0, %v937
        %939 = vdwg.mxu0
        %v940 = vand.u32 %v246, 4294901760
        %v941 = vsub.f32 %v246, %v940
        %v942 = vand.u32 %v941, 4294901760
        %v943 = vsub.f32 %v941, %v942
        %v944 = vand.u32 %v943, 4294901760
        %945 = vmatprep.subr.mxu0 %v944
        %v946 = vand.u32 %v245, 4294901760
        %v947 = vsub.f32 %v245, %v946
        %v948 = vand.u32 %v947, 4294901760
        %v949 = vsub.f32 %v947, %v948
        %v950 = vand.u32 %v949, 4294901760
        %951 = vmatpush1.msra.mxu0 %v950
        %v952 = vand.u32 %v250, 4294901760
        %v953 = vsub.f32 %v250, %v952
        %v954 = vand.u32 %v953, 4294901760
        %v955 = vsub.f32 %v953, %v954
        %v956 = vand.u32 %v955, 4294901760
        %957 = vmatprep.subr.mxu0 %v956
        %v958 = vand.u32 %v249, 4294901760
        %v959 = vsub.f32 %v249, %v958
        %v960 = vand.u32 %v959, 4294901760
        %v961 = vsub.f32 %v959, %v960
        %v962 = vand.u32 %v961, 4294901760
        %963 = vmatpush1.msra.mxu0 %v962
        %v964 = vand.u32 %v254, 4294901760
        %v965 = vsub.f32 %v254, %v964
        %v966 = vand.u32 %v965, 4294901760
        %v967 = vsub.f32 %v965, %v966
        %v968 = vand.u32 %v967, 4294901760
        %969 = vmatprep.subr.mxu0 %v968
        %v970 = vand.u32 %v253, 4294901760
        %v971 = vsub.f32 %v253, %v970
        %v972 = vand.u32 %v971, 4294901760
        %v973 = vsub.f32 %v971, %v972
        %v974 = vand.u32 %v973, 4294901760
        %975 = vmatpush1.msra.mxu0 %v974
        %v976 = vand.u32 %v258, 4294901760
        %v977 = vsub.f32 %v258, %v976
        %v978 = vand.u32 %v977, 4294901760
        %v979 = vsub.f32 %v977, %v978
        %v980 = vand.u32 %v979, 4294901760
        %981 = vmatprep.subr.mxu0 %v980
        %v982 = vand.u32 %v257, 4294901760
        %v983 = vsub.f32 %v257, %v982
        %v984 = vand.u32 %v983, 4294901760
        %v985 = vsub.f32 %v983, %v984
        %v986 = vand.u32 %v985, 4294901760
        %987 = vmatpush1.msra.mxu0 %v986
        %v988 = vand.u32 %v283, 4294901760
        %v989 = vsub.f32 %v283, %v988
        %v990 = vand.u32 %v989, 4294901760
        %v991 = vsub.f32 %v989, %v990
        %v992 = vand.u32 %v991, 4294901760
        %993 = vmatprep.subr.mxu0 %v992
        %v994 = vand.u32 %v280, 4294901760
        %v995 = vsub.f32 %v280, %v994
        %v996 = vand.u32 %v995, 4294901760
        %v997 = vsub.f32 %v995, %v996
        %v998 = vand.u32 %v997, 4294901760
        %999 = vmatpush1.msra.mxu0 %v998
        %1000 = vmatprep.subr.mxu0 0.0
        %1001 = vmatpush1.msra.mxu0 0.0
        %1002 = vmatprep.subr.mxu0 0.0
        %1003 = vmatpush1.msra.mxu0 0.0
        %1004 = vmatprep.subr.mxu0 0.0
        %1005 = vmatpush1.msra.mxu0 0.0
        %1006 = vmatprep.subr.mxu0 0.0
        %1007 = vmatpush1.msra.mxu0 0.0
        %1008 = vmatprep.subr.mxu0 0.0
        %1009 = vmatpush1.msra.mxu0 0.0
        %1010 = vmatprep.subr.mxu0 0.0
        %1011 = vmatpush1.msra.mxu0 0.0
        %1012 = vmatprep.subr.mxu0 0.0
        %1013 = vmatpush1.msra.mxu0 0.0
        %1014 = vmatprep.subr.mxu0 0.0
        %1015 = vmatpush1.msra.mxu0 0.0
        %1016 = vmatprep.subr.mxu0 0.0
        %1017 = vmatpush1.msra.mxu0 0.0
        %1018 = vmatprep.subr.mxu0 0.0
        %1019 = vmatpush1.msra.mxu0 0.0
        %1020 = vmatprep.subr.mxu0 0.0
        %1021 = vmatpush1.msra.mxu0 0.0
        %1022 = vmatprep.subr.mxu0 0.0
        %1023 = vmatpush1.msra.mxu0 0.0
        %1024 = vmatprep.subr.mxu0 0.0
        %1025 = vmatpush1.msra.mxu0 0.0
        %1026 = vmatprep.subr.mxu0 0.0
        %1027 = vmatpush1.msra.mxu0 0.0
        %1028 = vmatprep.subr.mxu0 0.0
        %1029 = vmatpush1.msra.mxu0 0.0
        %1030 = vmatprep.subr.mxu0 0.0
        %1031 = vmatpush1.msra.mxu0 0.0
        %1032 = vmatprep.subr.mxu0 0.0
        %1033 = vmatpush1.msra.mxu0 0.0
        %1034 = vmatprep.subr.mxu0 0.0
        %1035 = vmatpush1.msra.mxu0 0.0
        %1036 = vmatprep.subr.mxu0 0.0
        %1037 = vmatpush1.msra.mxu0 0.0
        %1038 = vmatprep.subr.mxu0 0.0
        %1039 = vmatpush1.msra.mxu0 0.0
        %1040 = vmatprep.subr.mxu0 0.0
        %1041 = vmatpush1.msra.mxu0 0.0
        %1042 = vmatprep.subr.mxu0 0.0
        %1043 = vmatpush1.msra.mxu0 0.0
        %1044 = vmatprep.subr.mxu0 0.0
        %1045 = vmatpush1.msra.mxu0 0.0
        %1046 = vmatprep.subr.mxu0 0.0
        %1047 = vmatpush1.msra.mxu0 0.0
        %1048 = vmatprep.subr.mxu0 0.0
        %1049 = vmatpush1.msra.mxu0 0.0
        %1050 = vmatprep.subr.mxu0 0.0
        %1051 = vmatpush1.msra.mxu0 0.0
        %1052 = vmatprep.subr.mxu0 0.0
        %1053 = vmatpush1.msra.mxu0 0.0
        %1054 = vmatprep.mubr.f32.mxu0 0.0
        %v1055 = vand.u32 %v270, 4294901760
        %1056 = vmatmul.mubr.f32.gmra.mrb[0].mxu0 %v1055
        %v1057 = vpop.f32.mrb[0].mxu0
        %v1058 = vadd.f32 %v936, %v1057
        %v1059 = vpop.f32.mrb[0].mxu0
        %v1060 = vadd.f32 %v938, %v1059
        %1061 = vdwg.mxu0
        %v1062 = vand.u32 %v246, 4294901760
        %v1063 = vsub.f32 %v246, %v1062
        %1064 = vmatprep.subr.mxu0 %v1063
        %v1065 = vand.u32 %v245, 4294901760
        %v1066 = vsub.f32 %v245, %v1065
        %1067 = vmatpush1.msra.mxu0 %v1066
        %v1068 = vand.u32 %v250, 4294901760
        %v1069 = vsub.f32 %v250, %v1068
        %1070 = vmatprep.subr.mxu0 %v1069
        %v1071 = vand.u32 %v249, 4294901760
        %v1072 = vsub.f32 %v249, %v1071
        %1073 = vmatpush1.msra.mxu0 %v1072
        %v1074 = vand.u32 %v254, 4294901760
        %v1075 = vsub.f32 %v254, %v1074
        %1076 = vmatprep.subr.mxu0 %v1075
        %v1077 = vand.u32 %v253, 4294901760
        %v1078 = vsub.f32 %v253, %v1077
        %1079 = vmatpush1.msra.mxu0 %v1078
        %v1080 = vand.u32 %v258, 4294901760
        %v1081 = vsub.f32 %v258, %v1080
        %1082 = vmatprep.subr.mxu0 %v1081
        %v1083 = vand.u32 %v257, 4294901760
        %v1084 = vsub.f32 %v257, %v1083
        %1085 = vmatpush1.msra.mxu0 %v1084
        %v1086 = vand.u32 %v283, 4294901760
        %v1087 = vsub.f32 %v283, %v1086
        %1088 = vmatprep.subr.mxu0 %v1087
        %v1089 = vand.u32 %v280, 4294901760
        %v1090 = vsub.f32 %v280, %v1089
        %1091 = vmatpush1.msra.mxu0 %v1090
        %1092 = vmatprep.subr.mxu0 0.0
        %1093 = vmatpush1.msra.mxu0 0.0
        %1094 = vmatprep.subr.mxu0 0.0
        %1095 = vmatpush1.msra.mxu0 0.0
        %1096 = vmatprep.subr.mxu0 0.0
        %1097 = vmatpush1.msra.mxu0 0.0
        %1098 = vmatprep.subr.mxu0 0.0
        %1099 = vmatpush1.msra.mxu0 0.0
        %1100 = vmatprep.subr.mxu0 0.0
        %1101 = vmatpush1.msra.mxu0 0.0
        %1102 = vmatprep.subr.mxu0 0.0
        %1103 = vmatpush1.msra.mxu0 0.0
        %1104 = vmatprep.subr.mxu0 0.0
        %1105 = vmatpush1.msra.mxu0 0.0
        %1106 = vmatprep.subr.mxu0 0.0
        %1107 = vmatpush1.msra.mxu0 0.0
        %1108 = vmatprep.subr.mxu0 0.0
        %1109 = vmatpush1.msra.mxu0 0.0
        %1110 = vmatprep.subr.mxu0 0.0
        %1111 = vmatpush1.msra.mxu0 0.0
        %1112 = vmatprep.subr.mxu0 0.0
        %1113 = vmatpush1.msra.mxu0 0.0
        %1114 = vmatprep.subr.mxu0 0.0
        %1115 = vmatpush1.msra.mxu0 0.0
        %1116 = vmatprep.subr.mxu0 0.0
        %1117 = vmatpush1.msra.mxu0 0.0
        %1118 = vmatprep.subr.mxu0 0.0
        %1119 = vmatpush1.msra.mxu0 0.0
        %1120 = vmatprep.subr.mxu0 0.0
        %1121 = vmatpush1.msra.mxu0 0.0
        %1122 = vmatprep.subr.mxu0 0.0
        %1123 = vmatpush1.msra.mxu0 0.0
        %1124 = vmatprep.subr.mxu0 0.0
        %1125 = vmatpush1.msra.mxu0 0.0
        %1126 = vmatprep.subr.mxu0 0.0
        %1127 = vmatpush1.msra.mxu0 0.0
        %1128 = vmatprep.subr.mxu0 0.0
        %1129 = vmatpush1.msra.mxu0 0.0
        %1130 = vmatprep.subr.mxu0 0.0
        %1131 = vmatpush1.msra.mxu0 0.0
        %1132 = vmatprep.subr.mxu0 0.0
        %1133 = vmatpush1.msra.mxu0 0.0
        %1134 = vmatprep.subr.mxu0 0.0
        %1135 = vmatpush1.msra.mxu0 0.0
        %1136 = vmatprep.subr.mxu0 0.0
        %1137 = vmatpush1.msra.mxu0 0.0
        %1138 = vmatprep.subr.mxu0 0.0
        %1139 = vmatpush1.msra.mxu0 0.0
        %1140 = vmatprep.subr.mxu0 0.0
        %1141 = vmatpush1.msra.mxu0 0.0
        %1142 = vmatprep.subr.mxu0 0.0
        %1143 = vmatpush1.msra.mxu0 0.0
        %1144 = vmatprep.subr.mxu0 0.0
        %1145 = vmatpush1.msra.mxu0 0.0
        %1146 = vmatprep.mubr.f32.mxu0 0.0
        %v1147 = vand.u32 %v270, 4294901760
        %v1148 = vsub.f32 %v270, %v1147
        %1149 = vmatmul.mubr.f32.gmra.mrb[0].mxu0 %v1148
        %v1150 = vpop.f32.mrb[0].mxu0
        %v1151 = vadd.f32 %v1058, %v1150
        %v1152 = vpop.f32.mrb[0].mxu0
        %v1153 = vadd.f32 %v1060, %v1152
        %1154 = vdwg.mxu0
        %v1155 = vand.u32 %v246, 4294901760
        %1156 = vmatprep.subr.mxu0 %v1155
        %v1157 = vand.u32 %v245, 4294901760
        %1158 = vmatpush1.msra.mxu0 %v1157
        %v1159 = vand.u32 %v250, 4294901760
        %1160 = vmatprep.subr.mxu0 %v1159
        %v1161 = vand.u32 %v249, 4294901760
        %1162 = vmatpush1.msra.mxu0 %v1161
        %v1163 = vand.u32 %v254, 4294901760
        %1164 = vmatprep.subr.mxu0 %v1163
        %v1165 = vand.u32 %v253, 4294901760
        %1166 = vmatpush1.msra.mxu0 %v1165
        %v1167 = vand.u32 %v258, 4294901760
        %1168 = vmatprep.subr.mxu0 %v1167
        %v1169 = vand.u32 %v257, 4294901760
        %1170 = vmatpush1.msra.mxu0 %v1169
        %v1171 = vand.u32 %v283, 4294901760
        %1172 = vmatprep.subr.mxu0 %v1171
        %v1173 = vand.u32 %v280, 4294901760
        %1174 = vmatpush1.msra.mxu0 %v1173
        %1175 = vmatprep.subr.mxu0 0.0
        %1176 = vmatpush1.msra.mxu0 0.0
        %1177 = vmatprep.subr.mxu0 0.0
        %1178 = vmatpush1.msra.mxu0 0.0
        %1179 = vmatprep.subr.mxu0 0.0
        %1180 = vmatpush1.msra.mxu0 0.0
        %1181 = vmatprep.subr.mxu0 0.0
        %1182 = vmatpush1.msra.mxu0 0.0
        %1183 = vmatprep.subr.mxu0 0.0
        %1184 = vmatpush1.msra.mxu0 0.0
        %1185 = vmatprep.subr.mxu0 0.0
        %1186 = vmatpush1.msra.mxu0 0.0
        %1187 = vmatprep.subr.mxu0 0.0
        %1188 = vmatpush1.msra.mxu0 0.0
        %1189 = vmatprep.subr.mxu0 0.0
        %1190 = vmatpush1.msra.mxu0 0.0
        %1191 = vmatprep.subr.mxu0 0.0
        %1192 = vmatpush1.msra.mxu0 0.0
        %1193 = vmatprep.subr.mxu0 0.0
        %1194 = vmatpush1.msra.mxu0 0.0
        %1195 = vmatprep.subr.mxu0 0.0
        %1196 = vmatpush1.msra.mxu0 0.0
        %1197 = vmatprep.subr.mxu0 0.0
        %1198 = vmatpush1.msra.mxu0 0.0
        %1199 = vmatprep.subr.mxu0 0.0
        %1200 = vmatpush1.msra.mxu0 0.0
        %1201 = vmatprep.subr.mxu0 0.0
        %1202 = vmatpush1.msra.mxu0 0.0
        %1203 = vmatprep.subr.mxu0 0.0
        %1204 = vmatpush1.msra.mxu0 0.0
        %1205 = vmatprep.subr.mxu0 0.0
        %1206 = vmatpush1.msra.mxu0 0.0
        %1207 = vmatprep.subr.mxu0 0.0
        %1208 = vmatpush1.msra.mxu0 0.0
        %1209 = vmatprep.subr.mxu0 0.0
        %1210 = vmatpush1.msra.mxu0 0.0
        %1211 = vmatprep.subr.mxu0 0.0
        %1212 = vmatpush1.msra.mxu0 0.0
        %1213 = vmatprep.subr.mxu0 0.0
        %1214 = vmatpush1.msra.mxu0 0.0
        %1215 = vmatprep.subr.mxu0 0.0
        %1216 = vmatpush1.msra.mxu0 0.0
        %1217 = vmatprep.subr.mxu0 0.0
        %1218 = vmatpush1.msra.mxu0 0.0
        %1219 = vmatprep.subr.mxu0 0.0
        %1220 = vmatpush1.msra.mxu0 0.0
        %1221 = vmatprep.subr.mxu0 0.0
        %1222 = vmatpush1.msra.mxu0 0.0
        %1223 = vmatprep.subr.mxu0 0.0
        %1224 = vmatpush1.msra.mxu0 0.0
        %1225 = vmatprep.subr.mxu0 0.0
        %1226 = vmatpush1.msra.mxu0 0.0
        %1227 = vmatprep.subr.mxu0 0.0
        %1228 = vmatpush1.msra.mxu0 0.0
        %1229 = vmatprep.mubr.f32.mxu0 0.0
        %v1230 = vand.u32 %v270, 4294901760
        %v1231 = vsub.f32 %v270, %v1230
        %v1232 = vand.u32 %v1231, 4294901760
        %1233 = vmatmul.mubr.f32.gmra.mrb[0].mxu0 %v1232
        %v1234 = vpop.f32.mrb[0].mxu0
        %v1235 = vadd.f32 %v1151, %v1234
        %v1236 = vpop.f32.mrb[0].mxu0
        %v1237 = vadd.f32 %v1153, %v1236
        %1238 = vdwg.mxu0
        %v1239 = vand.u32 %v246, 4294901760
        %v1240 = vsub.f32 %v246, %v1239
        %v1241 = vand.u32 %v1240, 4294901760
        %1242 = vmatprep.subr.mxu0 %v1241
        %v1243 = vand.u32 %v245, 4294901760
        %v1244 = vsub.f32 %v245, %v1243
        %v1245 = vand.u32 %v1244, 4294901760
        %1246 = vmatpush1.msra.mxu0 %v1245
        %v1247 = vand.u32 %v250, 4294901760
        %v1248 = vsub.f32 %v250, %v1247
        %v1249 = vand.u32 %v1248, 4294901760
        %1250 = vmatprep.subr.mxu0 %v1249
        %v1251 = vand.u32 %v249, 4294901760
        %v1252 = vsub.f32 %v249, %v1251
        %v1253 = vand.u32 %v1252, 4294901760
        %1254 = vmatpush1.msra.mxu0 %v1253
        %v1255 = vand.u32 %v254, 4294901760
        %v1256 = vsub.f32 %v254, %v1255
        %v1257 = vand.u32 %v1256, 4294901760
        %1258 = vmatprep.subr.mxu0 %v1257
        %v1259 = vand.u32 %v253, 4294901760
        %v1260 = vsub.f32 %v253, %v1259
        %v1261 = vand.u32 %v1260, 4294901760
        %1262 = vmatpush1.msra.mxu0 %v1261
        %v1263 = vand.u32 %v258, 4294901760
        %v1264 = vsub.f32 %v258, %v1263
        %v1265 = vand.u32 %v1264, 4294901760
        %1266 = vmatprep.subr.mxu0 %v1265
        %v1267 = vand.u32 %v257, 4294901760
        %v1268 = vsub.f32 %v257, %v1267
        %v1269 = vand.u32 %v1268, 4294901760
        %1270 = vmatpush1.msra.mxu0 %v1269
        %v1271 = vand.u32 %v283, 4294901760
        %v1272 = vsub.f32 %v283, %v1271
        %v1273 = vand.u32 %v1272, 4294901760
        %1274 = vmatprep.subr.mxu0 %v1273
        %v1275 = vand.u32 %v280, 4294901760
        %v1276 = vsub.f32 %v280, %v1275
        %v1277 = vand.u32 %v1276, 4294901760
        %1278 = vmatpush1.msra.mxu0 %v1277
        %1279 = vmatprep.subr.mxu0 0.0
        %1280 = vmatpush1.msra.mxu0 0.0
        %1281 = vmatprep.subr.mxu0 0.0
        %1282 = vmatpush1.msra.mxu0 0.0
        %1283 = vmatprep.subr.mxu0 0.0
        %1284 = vmatpush1.msra.mxu0 0.0
        %1285 = vmatprep.subr.mxu0 0.0
        %1286 = vmatpush1.msra.mxu0 0.0
        %1287 = vmatprep.subr.mxu0 0.0
        %1288 = vmatpush1.msra.mxu0 0.0
        %1289 = vmatprep.subr.mxu0 0.0
        %1290 = vmatpush1.msra.mxu0 0.0
        %1291 = vmatprep.subr.mxu0 0.0
        %1292 = vmatpush1.msra.mxu0 0.0
        %1293 = vmatprep.subr.mxu0 0.0
        %1294 = vmatpush1.msra.mxu0 0.0
        %1295 = vmatprep.subr.mxu0 0.0
        %1296 = vmatpush1.msra.mxu0 0.0
        %1297 = vmatprep.subr.mxu0 0.0
        %1298 = vmatpush1.msra.mxu0 0.0
        %1299 = vmatprep.subr.mxu0 0.0
        %1300 = vmatpush1.msra.mxu0 0.0
        %1301 = vmatprep.subr.mxu0 0.0
        %1302 = vmatpush1.msra.mxu0 0.0
        %1303 = vmatprep.subr.mxu0 0.0
        %1304 = vmatpush1.msra.mxu0 0.0
        %1305 = vmatprep.subr.mxu0 0.0
        %1306 = vmatpush1.msra.mxu0 0.0
        %1307 = vmatprep.subr.mxu0 0.0
        %1308 = vmatpush1.msra.mxu0 0.0
        %1309 = vmatprep.subr.mxu0 0.0
        %1310 = vmatpush1.msra.mxu0 0.0
        %1311 = vmatprep.subr.mxu0 0.0
        %1312 = vmatpush1.msra.mxu0 0.0
        %1313 = vmatprep.subr.mxu0 0.0
        %1314 = vmatpush1.msra.mxu0 0.0
        %1315 = vmatprep.subr.mxu0 0.0
        %1316 = vmatpush1.msra.mxu0 0.0
        %1317 = vmatprep.subr.mxu0 0.0
        %1318 = vmatpush1.msra.mxu0 0.0
        %1319 = vmatprep.subr.mxu0 0.0
        %1320 = vmatpush1.msra.mxu0 0.0
        %1321 = vmatprep.subr.mxu0 0.0
        %1322 = vmatpush1.msra.mxu0 0.0
        %1323 = vmatprep.subr.mxu0 0.0
        %1324 = vmatpush1.msra.mxu0 0.0
        %1325 = vmatprep.subr.mxu0 0.0
        %1326 = vmatpush1.msra.mxu0 0.0
        %1327 = vmatprep.subr.mxu0 0.0
        %1328 = vmatpush1.msra.mxu0 0.0
        %1329 = vmatprep.subr.mxu0 0.0
        %1330 = vmatpush1.msra.mxu0 0.0
        %1331 = vmatprep.subr.mxu0 0.0
        %1332 = vmatpush1.msra.mxu0 0.0
        %1333 = vmatprep.mubr.f32.mxu0 0.0
        %v1334 = vand.u32 %v270, 4294901760
        %1335 = vmatmul.mubr.f32.gmra.mrb[0].mxu0 %v1334
        %v1336 = vpop.f32.mrb[0].mxu0
        %v1337 = vadd.f32 %v1235, %v1336
        %v1338 = vpop.f32.mrb[0].mxu0
        %v1339 = vadd.f32 %v1237, %v1338
        %1340 = vdwg.mxu0
        %v1341 = vand.u32 %v246, 4294901760
        %1342 = vmatprep.subr.mxu0 %v1341
        %v1343 = vand.u32 %v245, 4294901760
        %1344 = vmatpush1.msra.mxu0 %v1343
        %v1345 = vand.u32 %v250, 4294901760
        %1346 = vmatprep.subr.mxu0 %v1345
        %v1347 = vand.u32 %v249, 4294901760
        %1348 = vmatpush1.msra.mxu0 %v1347
        %v1349 = vand.u32 %v254, 4294901760
        %1350 = vmatprep.subr.mxu0 %v1349
        %v1351 = vand.u32 %v253, 4294901760
        %1352 = vmatpush1.msra.mxu0 %v1351
        %v1353 = vand.u32 %v258, 4294901760
        %1354 = vmatprep.subr.mxu0 %v1353
        %v1355 = vand.u32 %v257, 4294901760
        %1356 = vmatpush1.msra.mxu0 %v1355
        %v1357 = vand.u32 %v283, 4294901760
        %1358 = vmatprep.subr.mxu0 %v1357
        %v1359 = vand.u32 %v280, 4294901760
        %1360 = vmatpush1.msra.mxu0 %v1359
        %1361 = vmatprep.subr.mxu0 0.0
        %1362 = vmatpush1.msra.mxu0 0.0
        %1363 = vmatprep.subr.mxu0 0.0
        %1364 = vmatpush1.msra.mxu0 0.0
        %1365 = vmatprep.subr.mxu0 0.0
        %1366 = vmatpush1.msra.mxu0 0.0
        %1367 = vmatprep.subr.mxu0 0.0
        %1368 = vmatpush1.msra.mxu0 0.0
        %1369 = vmatprep.subr.mxu0 0.0
        %1370 = vmatpush1.msra.mxu0 0.0
        %1371 = vmatprep.subr.mxu0 0.0
        %1372 = vmatpush1.msra.mxu0 0.0
        %1373 = vmatprep.subr.mxu0 0.0
        %1374 = vmatpush1.msra.mxu0 0.0
        %1375 = vmatprep.subr.mxu0 0.0
        %1376 = vmatpush1.msra.mxu0 0.0
        %1377 = vmatprep.subr.mxu0 0.0
        %1378 = vmatpush1.msra.mxu0 0.0
        %1379 = vmatprep.subr.mxu0 0.0
        %1380 = vmatpush1.msra.mxu0 0.0
        %1381 = vmatprep.subr.mxu0 0.0
        %1382 = vmatpush1.msra.mxu0 0.0
        %1383 = vmatprep.subr.mxu0 0.0
        %1384 = vmatpush1.msra.mxu0 0.0
        %1385 = vmatprep.subr.mxu0 0.0
        %1386 = vmatpush1.msra.mxu0 0.0
        %1387 = vmatprep.subr.mxu0 0.0
        %1388 = vmatpush1.msra.mxu0 0.0
        %1389 = vmatprep.subr.mxu0 0.0
        %1390 = vmatpush1.msra.mxu0 0.0
        %1391 = vmatprep.subr.mxu0 0.0
        %1392 = vmatpush1.msra.mxu0 0.0
        %1393 = vmatprep.subr.mxu0 0.0
        %1394 = vmatpush1.msra.mxu0 0.0
        %1395 = vmatprep.subr.mxu0 0.0
        %1396 = vmatpush1.msra.mxu0 0.0
        %1397 = vmatprep.subr.mxu0 0.0
        %1398 = vmatpush1.msra.mxu0 0.0
        %1399 = vmatprep.subr.mxu0 0.0
        %1400 = vmatpush1.msra.mxu0 0.0
        %1401 = vmatprep.subr.mxu0 0.0
        %1402 = vmatpush1.msra.mxu0 0.0
        %1403 = vmatprep.subr.mxu0 0.0
        %1404 = vmatpush1.msra.mxu0 0.0
        %1405 = vmatprep.subr.mxu0 0.0
        %1406 = vmatpush1.msra.mxu0 0.0
        %1407 = vmatprep.subr.mxu0 0.0
        %1408 = vmatpush1.msra.mxu0 0.0
        %1409 = vmatprep.subr.mxu0 0.0
        %1410 = vmatpush1.msra.mxu0 0.0
        %1411 = vmatprep.subr.mxu0 0.0
        %1412 = vmatpush1.msra.mxu0 0.0
        %1413 = vmatprep.subr.mxu0 0.0
        %1414 = vmatpush1.msra.mxu0 0.0
        %1415 = vmatprep.mubr.f32.mxu0 0.0
        %v1416 = vand.u32 %v270, 4294901760
        %1417 = vmatmul.mubr.f32.gmra.mrb[0].mxu0 %v1416
        %v1418 = vpop.f32.mrb[0].mxu0
        %v1419 = vadd.f32 %v1337, %v1418
        %v1420 = vpop.f32.mrb[0].mxu0
        %v1421 = vadd.f32 %v1339, %v1420
        %1422 = vdwg.mxu0
        %v1423 = vadd.f32 %v263, %v850
        %v1424 = vadd.f32 %v264, %v852
        %v1425 = vadd.f32 %v265, %v1419
        %v1426 = vadd.f32 %v266, %v1421
        %vm1427 = vcmp.ge.f32.partialorder %v1423, 0.0
        %vm1428 = vcmp.ge.f32.partialorder %v1424, 0.0
        %vm1429 = vcmp.ge.f32.partialorder %v1425, 0.0
        %vm1430 = vcmp.ge.f32.partialorder %v1426, 0.0
        %v1431 = vsel %vm1427, 1.0, -1.0
        %v1432 = vsel %vm1428, 1.0, -1.0
        %v1433 = vsel %vm1429, 1.0, -1.0
        %v1434 = vsel %vm1430, 1.0, -1.0
        %v1435 = vmul.f32 %v1431, 0.25
        %v1436 = vmul.f32 %v1432, 0.25
        %v1437 = vmul.f32 %v1433, 0.25
        %v1438 = vmul.f32 %v1434, 0.25
        %v1439 = vadd.f32 %v1423, %v1435
        %v1440 = vadd.f32 %v1424, %v1436
        %v1441 = vadd.f32 %v1425, %v1437
        %v1442 = vadd.f32 %v1426, %v1438
        %v1443 = vld [vmem:[%s242] sm:$0xff]
        %v1444 = vld [vmem:[%s242 + $0x8] sm:$0xff]
        %v1445 = vld [vmem:[%s242 + $0x10] sm:$0xff]
        %v1446 = vld [vmem:[%s242 + $0x18] sm:$0xff]
        %v1447 = vrcp.pop %v1439
        %v1448 = vmul.f32 %v1443, %v1447
        %v1449 = vrcp.pop %v1440
        %v1450 = vmul.f32 %v1444, %v1449
        %v1451 = vrcp.pop %v1441
        %v1452 = vmul.f32 %v1445, %v1451
        %v1453 = vrcp.pop %v1442
        %v1454 = vmul.f32 %v1446, %v1453
        %1459 = vrot.lane.b32.xlu0 %v1448, 73
        %v1460 = vpop.permute.xlu0 %1459
        %1461 = vrot.lane.b32.xlu0 %v1450, 73
        %v1462 = vpop.permute.xlu0 %1461
        %1463 = vrot.lane.b32.xlu0 %v1452, 73
        %v1464 = vpop.permute.xlu0 %1463
        %1465 = vrot.lane.b32.xlu0 %v1454, 73
        %v1466 = vpop.permute.xlu0 %1465
        %vm1467 = vcmask 596992
        %v1468 = vsel %vm1467, %v1460, %v1462
        %v1469 = vsel %vm1467, %v1462, %v1464
        %v1470 = vsel %vm1467, %v1464, %v1466
        %1474 = vst [vmem:[#allocation2] sm:$0xff] %v1468
        %1475 = vst [vmem:[#allocation2 + $0x8] sm:$0xff] %v1469
        %1476 = vst [vmem:[#allocation2 + $0x10] sm:$0xff] %v1470
        %1477 = vrot.lane.b32.xlu0 %v1448, 74
        %v1478 = vpop.permute.xlu0 %1477
        %1479 = vrot.lane.b32.xlu0 %v1450, 74
        %v1480 = vpop.permute.xlu0 %1479
        %1481 = vrot.lane.b32.xlu0 %v1452, 74
        %v1482 = vpop.permute.xlu0 %1481
        %1483 = vrot.lane.b32.xlu0 %v1454, 74
        %v1484 = vpop.permute.xlu0 %1483
        %vm1485 = vcmask 605184
        %v1486 = vsel %vm1485, %v1478, %v1480
        %v1487 = vsel %vm1485, %v1480, %v1482
        %v1488 = vsel %vm1485, %v1482, %v1484
        %1492 = vst [vmem:[#allocation2 + $0x18] sm:$0xff] %v1486
        %1493 = vst [vmem:[#allocation2 + $0x20] sm:$0xff] %v1487
        %1494 = vst [vmem:[#allocation2 + $0x28] sm:$0xff] %v1488
        %1495 = vrot.lane.b32.xlu0 %v1448, 75
        %v1496 = vpop.permute.xlu0 %1495
        %1497 = vrot.lane.b32.xlu0 %v1450, 75
        %v1498 = vpop.permute.xlu0 %1497
        %1499 = vrot.lane.b32.xlu0 %v1452, 75
        %v1500 = vpop.permute.xlu0 %1499
        %1501 = vrot.lane.b32.xlu0 %v1454, 75
        %v1502 = vpop.permute.xlu0 %1501
        %vm1503 = vcmask 613376
        %v1504 = vsel %vm1503, %v1496, %v1498
        %v1505 = vsel %vm1503, %v1498, %v1500
        %v1506 = vsel %vm1503, %v1500, %v1502
        %1510 = vst [vmem:[#allocation2 + $0x30] sm:$0xff] %v1504
        %1511 = vst [vmem:[#allocation2 + $0x38] sm:$0xff] %v1505
        %1512 = vst [vmem:[#allocation2 + $0x40] sm:$0xff] %v1506
        %1513 = vrot.lane.b32.xlu0 %v1448, 91
        %v1514 = vpop.permute.xlu0 %1513
        %1515 = vrot.lane.b32.xlu0 %v1450, 91
        %v1516 = vpop.permute.xlu0 %1515
        %1517 = vrot.lane.b32.xlu0 %v1452, 91
        %v1518 = vpop.permute.xlu0 %1517
        %1519 = vrot.lane.b32.xlu0 %v1454, 91
        %v1520 = vpop.permute.xlu0 %1519
        %vm1521 = vcmask 744448
        %v1522 = vsel %vm1521, %v1514, %v1516
        %v1523 = vsel %vm1521, %v1516, %v1518
        %v1524 = vsel %vm1521, %v1518, %v1520
        %1528 = vst [vmem:[#allocation2 + $0x48] sm:$0xff] %v1522
        %1529 = vst [vmem:[#allocation2 + $0x50] sm:$0xff] %v1523
        %1530 = vst [vmem:[#allocation2 + $0x58] sm:$0xff] %v1524
        %1531 = vrot.lane.b32.xlu0 %v1448, 92
        %v1532 = vpop.permute.xlu0 %1531
        %1533 = vrot.lane.b32.xlu0 %v1450, 92
        %v1534 = vpop.permute.xlu0 %1533
        %1535 = vrot.lane.b32.xlu0 %v1452, 92
        %v1536 = vpop.permute.xlu0 %1535
        %1537 = vrot.lane.b32.xlu0 %v1454, 92
        %v1538 = vpop.permute.xlu0 %1537
        %vm1539 = vcmask 752640
        %v1540 = vsel %vm1539, %v1532, %v1534
        %v1541 = vsel %vm1539, %v1534, %v1536
        %v1542 = vsel %vm1539, %v1536, %v1538
        %1546 = vst [vmem:[#allocation2 + $0x60] sm:$0xff] %v1540
        %1547 = vst [vmem:[#allocation2 + $0x68] sm:$0xff] %v1541
        %1548 = vst [vmem:[#allocation2 + $0x70] sm:$0xff] %v1542
        %1549 = vrot.lane.b32.xlu0 %v1448, 93
        %v1550 = vpop.permute.xlu0 %1549
        %1551 = vrot.lane.b32.xlu0 %v1450, 93
        %v1552 = vpop.permute.xlu0 %1551
        %1553 = vrot.lane.b32.xlu0 %v1452, 93
        %v1554 = vpop.permute.xlu0 %1553
        %1555 = vrot.lane.b32.xlu0 %v1454, 93
        %v1556 = vpop.permute.xlu0 %1555
        %vm1557 = vcmask 760832
        %v1558 = vsel %vm1557, %v1550, %v1552
        %v1559 = vsel %vm1557, %v1552, %v1554
        %v1560 = vsel %vm1557, %v1554, %v1556
        %1564 = vst [vmem:[#allocation2 + $0x78] sm:$0xff] %v1558
        %1565 = vst [vmem:[#allocation2 + $0x80] sm:$0xff] %v1559
        %1566 = vst [vmem:[#allocation2 + $0x88] sm:$0xff] %v1560
        %1567 = vrot.lane.b32.xlu0 %v1448, 109
        %v1568 = vpop.permute.xlu0 %1567
        %1569 = vrot.lane.b32.xlu0 %v1450, 109
        %v1570 = vpop.permute.xlu0 %1569
        %1571 = vrot.lane.b32.xlu0 %v1452, 109
        %v1572 = vpop.permute.xlu0 %1571
        %1573 = vrot.lane.b32.xlu0 %v1454, 109
        %v1574 = vpop.permute.xlu0 %1573
        %vm1575 = vcmask 891904
        %v1576 = vsel %vm1575, %v1568, %v1570
        %v1577 = vsel %vm1575, %v1570, %v1572
        %v1578 = vsel %vm1575, %v1572, %v1574
        %1582 = vst [vmem:[#allocation2 + $0x90] sm:$0xff] %v1576
        %1583 = vst [vmem:[#allocation2 + $0x98] sm:$0xff] %v1577
        %1584 = vst [vmem:[#allocation2 + $0xa0] sm:$0xff] %v1578
        %1585 = vrot.lane.b32.xlu0 %v1448, 110
        %v1586 = vpop.permute.xlu0 %1585
        %1587 = vrot.lane.b32.xlu0 %v1450, 110
        %v1588 = vpop.permute.xlu0 %1587
        %1589 = vrot.lane.b32.xlu0 %v1452, 110
        %v1590 = vpop.permute.xlu0 %1589
        %1591 = vrot.lane.b32.xlu0 %v1454, 110
        %v1592 = vpop.permute.xlu0 %1591
        %vm1593 = vcmask 900096
        %v1594 = vsel %vm1593, %v1586, %v1588
        %v1595 = vsel %vm1593, %v1588, %v1590
        %v1596 = vsel %vm1593, %v1590, %v1592
        %1600 = vst [vmem:[#allocation2 + $0xa8] sm:$0xff] %v1594
        %1601 = vst [vmem:[#allocation2 + $0xb0] sm:$0xff] %v1595
        %1602 = vst [vmem:[#allocation2 + $0xb8] sm:$0xff] %v1596
        %1603 = vrot.lane.b32.xlu0 %v1448, 111
        %v1604 = vpop.permute.xlu0 %1603
        %1605 = vrot.lane.b32.xlu0 %v1450, 111
        %v1606 = vpop.permute.xlu0 %1605
        %1607 = vrot.lane.b32.xlu0 %v1452, 111
        %v1608 = vpop.permute.xlu0 %1607
        %1609 = vrot.lane.b32.xlu0 %v1454, 111
        %v1610 = vpop.permute.xlu0 %1609
        %vm1611 = vcmask 908288
        %v1612 = vsel %vm1611, %v1604, %v1606
        %v1613 = vsel %vm1611, %v1606, %v1608
        %v1614 = vsel %vm1611, %v1608, %v1610
        %1618 = vst [vmem:[#allocation2 + $0xc0] sm:$0xff] %v1612
        %1619 = vst [vmem:[#allocation2 + $0xc8] sm:$0xff] %v1613
        %1620 = vst [vmem:[#allocation2 + $0xd0] sm:$0xff] %v1614
        %v1621 = vld [vmem:[%s4] sm:$0xff]
        %v1622 = vld [vmem:[#allocation2] sm:$0xff]
        %v1623 = vld [vmem:[#allocation2 + $0x8] sm:$0xff]
        %v1624 = vld [vmem:[#allocation2 + $0x10] sm:$0xff]
        %v1625 = vld [vmem:[#allocation2 + $0x18] sm:$0xff]
        %v1626 = vld [vmem:[#allocation2 + $0x20] sm:$0xff]
        %v1627 = vld [vmem:[#allocation2 + $0x28] sm:$0xff]
        %v1628 = vld [vmem:[#allocation2 + $0x30] sm:$0xff]
        %v1629 = vld [vmem:[#allocation2 + $0x38] sm:$0xff]
        %v1630 = vld [vmem:[#allocation2 + $0x40] sm:$0xff]
        %v1631 = vld [vmem:[#allocation2 + $0x48] sm:$0xff]
        %v1632 = vld [vmem:[#allocation2 + $0x50] sm:$0xff]
        %v1633 = vld [vmem:[#allocation2 + $0x58] sm:$0xff]
        %v1634 = vld [vmem:[#allocation2 + $0x60] sm:$0xff]
        %v1635 = vld [vmem:[#allocation2 + $0x68] sm:$0xff]
        %v1636 = vld [vmem:[#allocation2 + $0x70] sm:$0xff]
        %v1637 = vld [vmem:[#allocation2 + $0x78] sm:$0xff]
        %v1638 = vld [vmem:[#allocation2 + $0x80] sm:$0xff]
        %v1639 = vld [vmem:[#allocation2 + $0x88] sm:$0xff]
        %v1640 = vld [vmem:[#allocation2 + $0x90] sm:$0xff]
        %v1641 = vld [vmem:[#allocation2 + $0x98] sm:$0xff]
        %v1642 = vld [vmem:[#allocation2 + $0xa0] sm:$0xff]
        %v1643 = vld [vmem:[#allocation2 + $0xa8] sm:$0xff]
        %v1644 = vld [vmem:[#allocation2 + $0xb0] sm:$0xff]
        %v1645 = vld [vmem:[#allocation2 + $0xb8] sm:$0xff]
        %v1646 = vld [vmem:[#allocation2 + $0xc0] sm:$0xff]
        %v1647 = vld [vmem:[#allocation2 + $0xc8] sm:$0xff]
        %v1648 = vld [vmem:[#allocation2 + $0xd0] sm:$0xff]
        %vm1649 = vcmask 588800
        %v1651 = vsel %vm1649, %v1621, 0
        %v1653 = vand.u32 %v1623, 4294901760
        %1654 = vmatprep.subr.mxu0 %v1653
        %v1655 = vand.u32 %v1622, 4294901760
        %1656 = vmatpush1.msra.mxu0 %v1655
        %v1657 = vand.u32 %v1626, 4294901760
        %1658 = vmatprep.subr.mxu0 %v1657
        %v1659 = vand.u32 %v1625, 4294901760
        %1660 = vmatpush1.msra.mxu0 %v1659
        %v1661 = vand.u32 %v1629, 4294901760
        %1662 = vmatprep.subr.mxu0 %v1661
        %v1663 = vand.u32 %v1628, 4294901760
        %1664 = vmatpush1.msra.mxu0 %v1663
        %v1665 = vand.u32 %v1632, 4294901760
        %1666 = vmatprep.subr.mxu0 %v1665
        %v1667 = vand.u32 %v1631, 4294901760
        %1668 = vmatpush1.msra.mxu0 %v1667
        %v1669 = vand.u32 %v1635, 4294901760
        %1670 = vmatprep.subr.mxu0 %v1669
        %v1671 = vand.u32 %v1634, 4294901760
        %1672 = vmatpush1.msra.mxu0 %v1671
        %v1673 = vand.u32 %v1638, 4294901760
        %1674 = vmatprep.subr.mxu0 %v1673
        %v1675 = vand.u32 %v1637, 4294901760
        %1676 = vmatpush1.msra.mxu0 %v1675
        %v1677 = vand.u32 %v1641, 4294901760
        %1678 = vmatprep.subr.mxu0 %v1677
        %v1679 = vand.u32 %v1640, 4294901760
        %1680 = vmatpush1.msra.mxu0 %v1679
        %v1681 = vand.u32 %v1644, 4294901760
        %1682 = vmatprep.subr.mxu0 %v1681
        %v1683 = vand.u32 %v1643, 4294901760
        %1684 = vmatpush1.msra.mxu0 %v1683
        %v1685 = vand.u32 %v1647, 4294901760
        %1686 = vmatprep.subr.mxu0 %v1685
        %v1687 = vand.u32 %v1646, 4294901760
        %1688 = vmatpush1.msra.mxu0 %v1687
        %1689 = vmatprep.subr.mxu0 0.0
        %1690 = vmatpush1.msra.mxu0 0.0
        %1691 = vmatprep.subr.mxu0 0.0
        %1692 = vmatpush1.msra.mxu0 0.0
        %1693 = vmatprep.subr.mxu0 0.0
        %1694 = vmatpush1.msra.mxu0 0.0
        %1695 = vmatprep.subr.mxu0 0.0
        %1696 = vmatpush1.msra.mxu0 0.0
        %1697 = vmatprep.subr.mxu0 0.0
        %1698 = vmatpush1.msra.mxu0 0.0
        %1699 = vmatprep.subr.mxu0 0.0
        %1700 = vmatpush1.msra.mxu0 0.0
        %1701 = vmatprep.subr.mxu0 0.0
        %1702 = vmatpush1.msra.mxu0 0.0
        %1703 = vmatprep.subr.mxu0 0.0
        %1704 = vmatpush1.msra.mxu0 0.0
        %1705 = vmatprep.subr.mxu0 0.0
        %1706 = vmatpush1.msra.mxu0 0.0
        %1707 = vmatprep.subr.mxu0 0.0
        %1708 = vmatpush1.msra.mxu0 0.0
        %1709 = vmatprep.subr.mxu0 0.0
        %1710 = vmatpush1.msra.mxu0 0.0
        %1711 = vmatprep.subr.mxu0 0.0
        %1712 = vmatpush1.msra.mxu0 0.0
        %1713 = vmatprep.subr.mxu0 0.0
        %1714 = vmatpush1.msra.mxu0 0.0
        %1715 = vmatprep.subr.mxu0 0.0
        %1716 = vmatpush1.msra.mxu0 0.0
        %1717 = vmatprep.subr.mxu0 0.0
        %1718 = vmatpush1.msra.mxu0 0.0
        %1719 = vmatprep.subr.mxu0 0.0
        %1720 = vmatpush1.msra.mxu0 0.0
        %1721 = vmatprep.subr.mxu0 0.0
        %1722 = vmatpush1.msra.mxu0 0.0
        %1723 = vmatprep.subr.mxu0 0.0
        %1724 = vmatpush1.msra.mxu0 0.0
        %1725 = vmatprep.subr.mxu0 0.0
        %1726 = vmatpush1.msra.mxu0 0.0
        %1727 = vmatprep.subr.mxu0 0.0
        %1728 = vmatpush1.msra.mxu0 0.0
        %1729 = vmatprep.subr.mxu0 0.0
        %1730 = vmatpush1.msra.mxu0 0.0
        %1731 = vmatprep.subr.mxu0 0.0
        %1732 = vmatpush1.msra.mxu0 0.0
        %1733 = vmatprep.subr.mxu0 0.0
        %1734 = vmatpush1.msra.mxu0 0.0
        %1735 = vmatprep.mubr.f32.mxu0 0.0
        %v1736 = vand.u32 %v1651, 4294901760
        %v1737 = vsub.f32 %v1651, %v1736
        %v1738 = vand.u32 %v1737, 4294901760
        %v1739 = vsub.f32 %v1737, %v1738
        %v1740 = vand.u32 %v1739, 4294901760
        %1741 = vmatmul.mubr.f32.gmra.mrb[0].mxu0 %v1740
        %v1742 = vpop.f32.mrb[0].mxu0
        %v1743 = vadd.f32 0.0, %v1742
        %v1744 = vpop.f32.mrb[0].mxu0
        %v1745 = vadd.f32 0.0, %v1744
        %1746 = vdwg.mxu0
        %v1747 = vand.u32 %v1623, 4294901760
        %v1748 = vsub.f32 %v1623, %v1747
        %v1749 = vand.u32 %v1748, 4294901760
        %v1750 = vsub.f32 %v1748, %v1749
        %v1751 = vand.u32 %v1750, 4294901760
        %1752 = vmatprep.subr.mxu0 %v1751
        %v1753 = vand.u32 %v1622, 4294901760
        %v1754 = vsub.f32 %v1622, %v1753
        %v1755 = vand.u32 %v1754, 4294901760
        %v1756 = vsub.f32 %v1754, %v1755
        %v1757 = vand.u32 %v1756, 4294901760
        %1758 = vmatpush1.msra.mxu0 %v1757
        %v1759 = vand.u32 %v1626, 4294901760
        %v1760 = vsub.f32 %v1626, %v1759
        %v1761 = vand.u32 %v1760, 4294901760
        %v1762 = vsub.f32 %v1760, %v1761
        %v1763 = vand.u32 %v1762, 4294901760
        %1764 = vmatprep.subr.mxu0 %v1763
        %v1765 = vand.u32 %v1625, 4294901760
        %v1766 = vsub.f32 %v1625, %v1765
        %v1767 = vand.u32 %v1766, 4294901760
        %v1768 = vsub.f32 %v1766, %v1767
        %v1769 = vand.u32 %v1768, 4294901760
        %1770 = vmatpush1.msra.mxu0 %v1769
        %v1771 = vand.u32 %v1629, 4294901760
        %v1772 = vsub.f32 %v1629, %v1771
        %v1773 = vand.u32 %v1772, 4294901760
        %v1774 = vsub.f32 %v1772, %v1773
        %v1775 = vand.u32 %v1774, 4294901760
        %1776 = vmatprep.subr.mxu0 %v1775
        %v1777 = vand.u32 %v1628, 4294901760
        %v1778 = vsub.f32 %v1628, %v1777
        %v1779 = vand.u32 %v1778, 4294901760
        %v1780 = vsub.f32 %v1778, %v1779
        %v1781 = vand.u32 %v1780, 4294901760
        %1782 = vmatpush1.msra.mxu0 %v1781
        %v1783 = vand.u32 %v1632, 4294901760
        %v1784 = vsub.f32 %v1632, %v1783
        %v1785 = vand.u32 %v1784, 4294901760
        %v1786 = vsub.f32 %v1784, %v1785
        %v1787 = vand.u32 %v1786, 4294901760
        %1788 = vmatprep.subr.mxu0 %v1787
        %v1789 = vand.u32 %v1631, 4294901760
        %v1790 = vsub.f32 %v1631, %v1789
        %v1791 = vand.u32 %v1790, 4294901760
        %v1792 = vsub.f32 %v1790, %v1791
        %v1793 = vand.u32 %v1792, 4294901760
        %1794 = vmatpush1.msra.mxu0 %v1793
        %v1795 = vand.u32 %v1635, 4294901760
        %v1796 = vsub.f32 %v1635, %v1795
        %v1797 = vand.u32 %v1796, 4294901760
        %v1798 = vsub.f32 %v1796, %v1797
        %v1799 = vand.u32 %v1798, 4294901760
        %1800 = vmatprep.subr.mxu0 %v1799
        %v1801 = vand.u32 %v1634, 4294901760
        %v1802 = vsub.f32 %v1634, %v1801
        %v1803 = vand.u32 %v1802, 4294901760
        %v1804 = vsub.f32 %v1802, %v1803
        %v1805 = vand.u32 %v1804, 4294901760
        %1806 = vmatpush1.msra.mxu0 %v1805
        %v1807 = vand.u32 %v1638, 4294901760
        %v1808 = vsub.f32 %v1638, %v1807
        %v1809 = vand.u32 %v1808, 4294901760
        %v1810 = vsub.f32 %v1808, %v1809
        %v1811 = vand.u32 %v1810, 4294901760
        %1812 = vmatprep.subr.mxu0 %v1811
        %v1813 = vand.u32 %v1637, 4294901760
        %v1814 = vsub.f32 %v1637, %v1813
        %v1815 = vand.u32 %v1814, 4294901760
        %v1816 = vsub.f32 %v1814, %v1815
        %v1817 = vand.u32 %v1816, 4294901760
        %1818 = vmatpush1.msra.mxu0 %v1817
        %v1819 = vand.u32 %v1641, 4294901760
        %v1820 = vsub.f32 %v1641, %v1819
        %v1821 = vand.u32 %v1820, 4294901760
        %v1822 = vsub.f32 %v1820, %v1821
        %v1823 = vand.u32 %v1822, 4294901760
        %1824 = vmatprep.subr.mxu0 %v1823
        %v1825 = vand.u32 %v1640, 4294901760
        %v1826 = vsub.f32 %v1640, %v1825
        %v1827 = vand.u32 %v1826, 4294901760
        %v1828 = vsub.f32 %v1826, %v1827
        %v1829 = vand.u32 %v1828, 4294901760
        %1830 = vmatpush1.msra.mxu0 %v1829
        %v1831 = vand.u32 %v1644, 4294901760
        %v1832 = vsub.f32 %v1644, %v1831
        %v1833 = vand.u32 %v1832, 4294901760
        %v1834 = vsub.f32 %v1832, %v1833
        %v1835 = vand.u32 %v1834, 4294901760
        %1836 = vmatprep.subr.mxu0 %v1835
        %v1837 = vand.u32 %v1643, 4294901760
        %v1838 = vsub.f32 %v1643, %v1837
        %v1839 = vand.u32 %v1838, 4294901760
        %v1840 = vsub.f32 %v1838, %v1839
        %v1841 = vand.u32 %v1840, 4294901760
        %1842 = vmatpush1.msra.mxu0 %v1841
        %v1843 = vand.u32 %v1647, 4294901760
        %v1844 = vsub.f32 %v1647, %v1843
        %v1845 = vand.u32 %v1844, 4294901760
        %v1846 = vsub.f32 %v1844, %v1845
        %v1847 = vand.u32 %v1846, 4294901760
        %1848 = vmatprep.subr.mxu0 %v1847
        %v1849 = vand.u32 %v1646, 4294901760
        %v1850 = vsub.f32 %v1646, %v1849
        %v1851 = vand.u32 %v1850, 4294901760
        %v1852 = vsub.f32 %v1850, %v1851
        %v1853 = vand.u32 %v1852, 4294901760
        %1854 = vmatpush1.msra.mxu0 %v1853
        %1855 = vmatprep.subr.mxu0 0.0
        %1856 = vmatpush1.msra.mxu0 0.0
        %1857 = vmatprep.subr.mxu0 0.0
        %1858 = vmatpush1.msra.mxu0 0.0
        %1859 = vmatprep.subr.mxu0 0.0
        %1860 = vmatpush1.msra.mxu0 0.0
        %1861 = vmatprep.subr.mxu0 0.0
        %1862 = vmatpush1.msra.mxu0 0.0
        %1863 = vmatprep.subr.mxu0 0.0
        %1864 = vmatpush1.msra.mxu0 0.0
        %1865 = vmatprep.subr.mxu0 0.0
        %1866 = vmatpush1.msra.mxu0 0.0
        %1867 = vmatprep.subr.mxu0 0.0
        %1868 = vmatpush1.msra.mxu0 0.0
        %1869 = vmatprep.subr.mxu0 0.0
        %1870 = vmatpush1.msra.mxu0 0.0
        %1871 = vmatprep.subr.mxu0 0.0
        %1872 = vmatpush1.msra.mxu0 0.0
        %1873 = vmatprep.subr.mxu0 0.0
        %1874 = vmatpush1.msra.mxu0 0.0
        %1875 = vmatprep.subr.mxu0 0.0
        %1876 = vmatpush1.msra.mxu0 0.0
        %1877 = vmatprep.subr.mxu0 0.0
        %1878 = vmatpush1.msra.mxu0 0.0
        %1879 = vmatprep.subr.mxu0 0.0
        %1880 = vmatpush1.msra.mxu0 0.0
        %1881 = vmatprep.subr.mxu0 0.0
        %1882 = vmatpush1.msra.mxu0 0.0
        %1883 = vmatprep.subr.mxu0 0.0
        %1884 = vmatpush1.msra.mxu0 0.0
        %1885 = vmatprep.subr.mxu0 0.0
        %1886 = vmatpush1.msra.mxu0 0.0
        %1887 = vmatprep.subr.mxu0 0.0
        %1888 = vmatpush1.msra.mxu0 0.0
        %1889 = vmatprep.subr.mxu0 0.0
        %1890 = vmatpush1.msra.mxu0 0.0
        %1891 = vmatprep.subr.mxu0 0.0
        %1892 = vmatpush1.msra.mxu0 0.0
        %1893 = vmatprep.subr.mxu0 0.0
        %1894 = vmatpush1.msra.mxu0 0.0
        %1895 = vmatprep.subr.mxu0 0.0
        %1896 = vmatpush1.msra.mxu0 0.0
        %1897 = vmatprep.subr.mxu0 0.0
        %1898 = vmatpush1.msra.mxu0 0.0
        %1899 = vmatprep.subr.mxu0 0.0
        %1900 = vmatpush1.msra.mxu0 0.0
        %1901 = vmatprep.mubr.f32.mxu0 0.0
        %v1902 = vand.u32 %v1651, 4294901760
        %1903 = vmatmul.mubr.f32.gmra.mrb[0].mxu0 %v1902
        %v1904 = vpop.f32.mrb[0].mxu0
        %v1905 = vadd.f32 %v1743, %v1904
        %v1906 = vpop.f32.mrb[0].mxu0
        %v1907 = vadd.f32 %v1745, %v1906
        %1908 = vdwg.mxu0
        %v1909 = vand.u32 %v1623, 4294901760
        %v1910 = vsub.f32 %v1623, %v1909
        %1911 = vmatprep.subr.mxu0 %v1910
        %v1912 = vand.u32 %v1622, 4294901760
        %v1913 = vsub.f32 %v1622, %v1912
        %1914 = vmatpush1.msra.mxu0 %v1913
        %v1915 = vand.u32 %v1626, 4294901760
        %v1916 = vsub.f32 %v1626, %v1915
        %1917 = vmatprep.subr.mxu0 %v1916
        %v1918 = vand.u32 %v1625, 4294901760
        %v1919 = vsub.f32 %v1625, %v1918
        %1920 = vmatpush1.msra.mxu0 %v1919
        %v1921 = vand.u32 %v1629, 4294901760
        %v1922 = vsub.f32 %v1629, %v1921
        %1923 = vmatprep.subr.mxu0 %v1922
        %v1924 = vand.u32 %v1628, 4294901760
        %v1925 = vsub.f32 %v1628, %v1924
        %1926 = vmatpush1.msra.mxu0 %v1925
        %v1927 = vand.u32 %v1632, 4294901760
        %v1928 = vsub.f32 %v1632, %v1927
        %1929 = vmatprep.subr.mxu0 %v1928
        %v1930 = vand.u32 %v1631, 4294901760
        %v1931 = vsub.f32 %v1631, %v1930
        %1932 = vmatpush1.msra.mxu0 %v1931
        %v1933 = vand.u32 %v1635, 4294901760
        %v1934 = vsub.f32 %v1635, %v1933
        %1935 = vmatprep.subr.mxu0 %v1934
        %v1936 = vand.u32 %v1634, 4294901760
        %v1937 = vsub.f32 %v1634, %v1936
        %1938 = vmatpush1.msra.mxu0 %v1937
        %v1939 = vand.u32 %v1638, 4294901760
        %v1940 = vsub.f32 %v1638, %v1939
        %1941 = vmatprep.subr.mxu0 %v1940
        %v1942 = vand.u32 %v1637, 4294901760
        %v1943 = vsub.f32 %v1637, %v1942
        %1944 = vmatpush1.msra.mxu0 %v1943
        %v1945 = vand.u32 %v1641, 4294901760
        %v1946 = vsub.f32 %v1641, %v1945
        %1947 = vmatprep.subr.mxu0 %v1946
        %v1948 = vand.u32 %v1640, 4294901760
        %v1949 = vsub.f32 %v1640, %v1948
        %1950 = vmatpush1.msra.mxu0 %v1949
        %v1951 = vand.u32 %v1644, 4294901760
        %v1952 = vsub.f32 %v1644, %v1951
        %1953 = vmatprep.subr.mxu0 %v1952
        %v1954 = vand.u32 %v1643, 4294901760
        %v1955 = vsub.f32 %v1643, %v1954
        %1956 = vmatpush1.msra.mxu0 %v1955
        %v1957 = vand.u32 %v1647, 4294901760
        %v1958 = vsub.f32 %v1647, %v1957
        %1959 = vmatprep.subr.mxu0 %v1958
        %v1960 = vand.u32 %v1646, 4294901760
        %v1961 = vsub.f32 %v1646, %v1960
        %1962 = vmatpush1.msra.mxu0 %v1961
        %1963 = vmatprep.subr.mxu0 0.0
        %1964 = vmatpush1.msra.mxu0 0.0
        %1965 = vmatprep.subr.mxu0 0.0
        %1966 = vmatpush1.msra.mxu0 0.0
        %1967 = vmatprep.subr.mxu0 0.0
        %1968 = vmatpush1.msra.mxu0 0.0
        %1969 = vmatprep.subr.mxu0 0.0
        %1970 = vmatpush1.msra.mxu0 0.0
        %1971 = vmatprep.subr.mxu0 0.0
        %1972 = vmatpush1.msra.mxu0 0.0
        %1973 = vmatprep.subr.mxu0 0.0
        %1974 = vmatpush1.msra.mxu0 0.0
        %1975 = vmatprep.subr.mxu0 0.0
        %1976 = vmatpush1.msra.mxu0 0.0
        %1977 = vmatprep.subr.mxu0 0.0
        %1978 = vmatpush1.msra.mxu0 0.0
        %1979 = vmatprep.subr.mxu0 0.0
        %1980 = vmatpush1.msra.mxu0 0.0
        %1981 = vmatprep.subr.mxu0 0.0
        %1982 = vmatpush1.msra.mxu0 0.0
        %1983 = vmatprep.subr.mxu0 0.0
        %1984 = vmatpush1.msra.mxu0 0.0
        %1985 = vmatprep.subr.mxu0 0.0
        %1986 = vmatpush1.msra.mxu0 0.0
        %1987 = vmatprep.subr.mxu0 0.0
        %1988 = vmatpush1.msra.mxu0 0.0
        %1989 = vmatprep.subr.mxu0 0.0
        %1990 = vmatpush1.msra.mxu0 0.0
        %1991 = vmatprep.subr.mxu0 0.0
        %1992 = vmatpush1.msra.mxu0 0.0
        %1993 = vmatprep.subr.mxu0 0.0
        %1994 = vmatpush1.msra.mxu0 0.0
        %1995 = vmatprep.subr.mxu0 0.0
        %1996 = vmatpush1.msra.mxu0 0.0
        %1997 = vmatprep.subr.mxu0 0.0
        %1998 = vmatpush1.msra.mxu0 0.0
        %1999 = vmatprep.subr.mxu0 0.0
        %2000 = vmatpush1.msra.mxu0 0.0
        %2001 = vmatprep.subr.mxu0 0.0
        %2002 = vmatpush1.msra.mxu0 0.0
        %2003 = vmatprep.subr.mxu0 0.0
        %2004 = vmatpush1.msra.mxu0 0.0
        %2005 = vmatprep.subr.mxu0 0.0
        %2006 = vmatpush1.msra.mxu0 0.0
        %2007 = vmatprep.subr.mxu0 0.0
        %2008 = vmatpush1.msra.mxu0 0.0
        %2009 = vmatprep.mubr.f32.mxu0 0.0
        %v2010 = vand.u32 %v1651, 4294901760
        %v2011 = vsub.f32 %v1651, %v2010
        %2012 = vmatmul.mubr.f32.gmra.mrb[0].mxu0 %v2011
        %v2013 = vpop.f32.mrb[0].mxu0
        %v2014 = vadd.f32 %v1905, %v2013
        %v2015 = vpop.f32.mrb[0].mxu0
        %v2016 = vadd.f32 %v1907, %v2015
        %2017 = vdwg.mxu0
        %v2018 = vand.u32 %v1623, 4294901760
        %2019 = vmatprep.subr.mxu0 %v2018
        %v2020 = vand.u32 %v1622, 4294901760
        %2021 = vmatpush1.msra.mxu0 %v2020
        %v2022 = vand.u32 %v1626, 4294901760
        %2023 = vmatprep.subr.mxu0 %v2022
        %v2024 = vand.u32 %v1625, 4294901760
        %2025 = vmatpush1.msra.mxu0 %v2024
        %v2026 = vand.u32 %v1629, 4294901760
        %2027 = vmatprep.subr.mxu0 %v2026
        %v2028 = vand.u32 %v1628, 4294901760
        %2029 = vmatpush1.msra.mxu0 %v2028
        %v2030 = vand.u32 %v1632, 4294901760
        %2031 = vmatprep.subr.mxu0 %v2030
        %v2032 = vand.u32 %v1631, 4294901760
        %2033 = vmatpush1.msra.mxu0 %v2032
        %v2034 = vand.u32 %v1635, 4294901760
        %2035 = vmatprep.subr.mxu0 %v2034
        %v2036 = vand.u32 %v1634, 4294901760
        %2037 = vmatpush1.msra.mxu0 %v2036
        %v2038 = vand.u32 %v1638, 4294901760
        %2039 = vmatprep.subr.mxu0 %v2038
        %v2040 = vand.u32 %v1637, 4294901760
        %2041 = vmatpush1.msra.mxu0 %v2040
        %v2042 = vand.u32 %v1641, 4294901760
        %2043 = vmatprep.subr.mxu0 %v2042
        %v2044 = vand.u32 %v1640, 4294901760
        %2045 = vmatpush1.msra.mxu0 %v2044
        %v2046 = vand.u32 %v1644, 4294901760
        %2047 = vmatprep.subr.mxu0 %v2046
        %v2048 = vand.u32 %v1643, 4294901760
        %2049 = vmatpush1.msra.mxu0 %v2048
        %v2050 = vand.u32 %v1647, 4294901760
        %2051 = vmatprep.subr.mxu0 %v2050
        %v2052 = vand.u32 %v1646, 4294901760
        %2053 = vmatpush1.msra.mxu0 %v2052
        %2054 = vmatprep.subr.mxu0 0.0
        %2055 = vmatpush1.msra.mxu0 0.0
        %2056 = vmatprep.subr.mxu0 0.0
        %2057 = vmatpush1.msra.mxu0 0.0
        %2058 = vmatprep.subr.mxu0 0.0
        %2059 = vmatpush1.msra.mxu0 0.0
        %2060 = vmatprep.subr.mxu0 0.0
        %2061 = vmatpush1.msra.mxu0 0.0
        %2062 = vmatprep.subr.mxu0 0.0
        %2063 = vmatpush1.msra.mxu0 0.0
        %2064 = vmatprep.subr.mxu0 0.0
        %2065 = vmatpush1.msra.mxu0 0.0
        %2066 = vmatprep.subr.mxu0 0.0
        %2067 = vmatpush1.msra.mxu0 0.0
        %2068 = vmatprep.subr.mxu0 0.0
        %2069 = vmatpush1.msra.mxu0 0.0
        %2070 = vmatprep.subr.mxu0 0.0
        %2071 = vmatpush1.msra.mxu0 0.0
        %2072 = vmatprep.subr.mxu0 0.0
        %2073 = vmatpush1.msra.mxu0 0.0
        %2074 = vmatprep.subr.mxu0 0.0
        %2075 = vmatpush1.msra.mxu0 0.0
        %2076 = vmatprep.subr.mxu0 0.0
        %2077 = vmatpush1.msra.mxu0 0.0
        %2078 = vmatprep.subr.mxu0 0.0
        %2079 = vmatpush1.msra.mxu0 0.0
        %2080 = vmatprep.subr.mxu0 0.0
        %2081 = vmatpush1.msra.mxu0 0.0
        %2082 = vmatprep.subr.mxu0 0.0
        %2083 = vmatpush1.msra.mxu0 0.0
        %2084 = vmatprep.subr.mxu0 0.0
        %2085 = vmatpush1.msra.mxu0 0.0
        %2086 = vmatprep.subr.mxu0 0.0
        %2087 = vmatpush1.msra.mxu0 0.0
        %2088 = vmatprep.subr.mxu0 0.0
        %2089 = vmatpush1.msra.mxu0 0.0
        %2090 = vmatprep.subr.mxu0 0.0
        %2091 = vmatpush1.msra.mxu0 0.0
        %2092 = vmatprep.subr.mxu0 0.0
        %2093 = vmatpush1.msra.mxu0 0.0
        %2094 = vmatprep.subr.mxu0 0.0
        %2095 = vmatpush1.msra.mxu0 0.0
        %2096 = vmatprep.subr.mxu0 0.0
        %2097 = vmatpush1.msra.mxu0 0.0
        %2098 = vmatprep.subr.mxu0 0.0
        %2099 = vmatpush1.msra.mxu0 0.0
        %2100 = vmatprep.mubr.f32.mxu0 0.0
        %v2101 = vand.u32 %v1651, 4294901760
        %v2102 = vsub.f32 %v1651, %v2101
        %v2103 = vand.u32 %v2102, 4294901760
        %2104 = vmatmul.mubr.f32.gmra.mrb[0].mxu0 %v2103
        %v2105 = vpop.f32.mrb[0].mxu0
        %v2106 = vadd.f32 %v2014, %v2105
        %v2107 = vpop.f32.mrb[0].mxu0
        %v2108 = vadd.f32 %v2016, %v2107
        %2109 = vdwg.mxu0
        %v2110 = vand.u32 %v1623, 4294901760
        %v2111 = vsub.f32 %v1623, %v2110
        %v2112 = vand.u32 %v2111, 4294901760
        %2113 = vmatprep.subr.mxu0 %v2112
        %v2114 = vand.u32 %v1622, 4294901760
        %v2115 = vsub.f32 %v1622, %v2114
        %v2116 = vand.u32 %v2115, 4294901760
        %2117 = vmatpush1.msra.mxu0 %v2116
        %v2118 = vand.u32 %v1626, 4294901760
        %v2119 = vsub.f32 %v1626, %v2118
        %v2120 = vand.u32 %v2119, 4294901760
        %2121 = vmatprep.subr.mxu0 %v2120
        %v2122 = vand.u32 %v1625, 4294901760
        %v2123 = vsub.f32 %v1625, %v2122
        %v2124 = vand.u32 %v2123, 4294901760
        %2125 = vmatpush1.msra.mxu0 %v2124
        %v2126 = vand.u32 %v1629, 4294901760
        %v2127 = vsub.f32 %v1629, %v2126
        %v2128 = vand.u32 %v2127, 4294901760
        %2129 = vmatprep.subr.mxu0 %v2128
        %v2130 = vand.u32 %v1628, 4294901760
        %v2131 = vsub.f32 %v1628, %v2130
        %v2132 = vand.u32 %v2131, 4294901760
        %2133 = vmatpush1.msra.mxu0 %v2132
        %v2134 = vand.u32 %v1632, 4294901760
        %v2135 = vsub.f32 %v1632, %v2134
        %v2136 = vand.u32 %v2135, 4294901760
        %2137 = vmatprep.subr.mxu0 %v2136
        %v2138 = vand.u32 %v1631, 4294901760
        %v2139 = vsub.f32 %v1631, %v2138
        %v2140 = vand.u32 %v2139, 4294901760
        %2141 = vmatpush1.msra.mxu0 %v2140
        %v2142 = vand.u32 %v1635, 4294901760
        %v2143 = vsub.f32 %v1635, %v2142
        %v2144 = vand.u32 %v2143, 4294901760
        %2145 = vmatprep.subr.mxu0 %v2144
        %v2146 = vand.u32 %v1634, 4294901760
        %v2147 = vsub.f32 %v1634, %v2146
        %v2148 = vand.u32 %v2147, 4294901760
        %2149 = vmatpush1.msra.mxu0 %v2148
        %v2150 = vand.u32 %v1638, 4294901760
        %v2151 = vsub.f32 %v1638, %v2150
        %v2152 = vand.u32 %v2151, 4294901760
        %2153 = vmatprep.subr.mxu0 %v2152
        %v2154 = vand.u32 %v1637, 4294901760
        %v2155 = vsub.f32 %v1637, %v2154
        %v2156 = vand.u32 %v2155, 4294901760
        %2157 = vmatpush1.msra.mxu0 %v2156
        %v2158 = vand.u32 %v1641, 4294901760
        %v2159 = vsub.f32 %v1641, %v2158
        %v2160 = vand.u32 %v2159, 4294901760
        %2161 = vmatprep.subr.mxu0 %v2160
        %v2162 = vand.u32 %v1640, 4294901760
        %v2163 = vsub.f32 %v1640, %v2162
        %v2164 = vand.u32 %v2163, 4294901760
        %2165 = vmatpush1.msra.mxu0 %v2164
        %v2166 = vand.u32 %v1644, 4294901760
        %v2167 = vsub.f32 %v1644, %v2166
        %v2168 = vand.u32 %v2167, 4294901760
        %2169 = vmatprep.subr.mxu0 %v2168
        %v2170 = vand.u32 %v1643, 4294901760
        %v2171 = vsub.f32 %v1643, %v2170
        %v2172 = vand.u32 %v2171, 4294901760
        %2173 = vmatpush1.msra.mxu0 %v2172
        %v2174 = vand.u32 %v1647, 4294901760
        %v2175 = vsub.f32 %v1647, %v2174
        %v2176 = vand.u32 %v2175, 4294901760
        %2177 = vmatprep.subr.mxu0 %v2176
        %v2178 = vand.u32 %v1646, 4294901760
        %v2179 = vsub.f32 %v1646, %v2178
        %v2180 = vand.u32 %v2179, 4294901760
        %2181 = vmatpush1.msra.mxu0 %v2180
        %2182 = vmatprep.subr.mxu0 0.0
        %2183 = vmatpush1.msra.mxu0 0.0
        %2184 = vmatprep.subr.mxu0 0.0
        %2185 = vmatpush1.msra.mxu0 0.0
        %2186 = vmatprep.subr.mxu0 0.0
        %2187 = vmatpush1.msra.mxu0 0.0
        %2188 = vmatprep.subr.mxu0 0.0
        %2189 = vmatpush1.msra.mxu0 0.0
        %2190 = vmatprep.subr.mxu0 0.0
        %2191 = vmatpush1.msra.mxu0 0.0
        %2192 = vmatprep.subr.mxu0 0.0
        %2193 = vmatpush1.msra.mxu0 0.0
        %2194 = vmatprep.subr.mxu0 0.0
        %2195 = vmatpush1.msra.mxu0 0.0
        %2196 = vmatprep.subr.mxu0 0.0
        %2197 = vmatpush1.msra.mxu0 0.0
        %2198 = vmatprep.subr.mxu0 0.0
        %2199 = vmatpush1.msra.mxu0 0.0
        %2200 = vmatprep.subr.mxu0 0.0
        %2201 = vmatpush1.msra.mxu0 0.0
        %2202 = vmatprep.subr.mxu0 0.0
        %2203 = vmatpush1.msra.mxu0 0.0
        %2204 = vmatprep.subr.mxu0 0.0
        %2205 = vmatpush1.msra.mxu0 0.0
        %2206 = vmatprep.subr.mxu0 0.0
        %2207 = vmatpush1.msra.mxu0 0.0
        %2208 = vmatprep.subr.mxu0 0.0
        %2209 = vmatpush1.msra.mxu0 0.0
        %2210 = vmatprep.subr.mxu0 0.0
        %2211 = vmatpush1.msra.mxu0 0.0
        %2212 = vmatprep.subr.mxu0 0.0
        %2213 = vmatpush1.msra.mxu0 0.0
        %2214 = vmatprep.subr.mxu0 0.0
        %2215 = vmatpush1.msra.mxu0 0.0
        %2216 = vmatprep.subr.mxu0 0.0
        %2217 = vmatpush1.msra.mxu0 0.0
        %2218 = vmatprep.subr.mxu0 0.0
        %2219 = vmatpush1.msra.mxu0 0.0
        %2220 = vmatprep.subr.mxu0 0.0
        %2221 = vmatpush1.msra.mxu0 0.0
        %2222 = vmatprep.subr.mxu0 0.0
        %2223 = vmatpush1.msra.mxu0 0.0
        %2224 = vmatprep.subr.mxu0 0.0
        %2225 = vmatpush1.msra.mxu0 0.0
        %2226 = vmatprep.subr.mxu0 0.0
        %2227 = vmatpush1.msra.mxu0 0.0
        %2228 = vmatprep.mubr.f32.mxu0 0.0
        %v2229 = vand.u32 %v1651, 4294901760
        %2230 = vmatmul.mubr.f32.gmra.mrb[0].mxu0 %v2229
        %v2231 = vpop.f32.mrb[0].mxu0
        %v2232 = vadd.f32 %v2106, %v2231
        %v2233 = vpop.f32.mrb[0].mxu0
        %v2234 = vadd.f32 %v2108, %v2233
        %2235 = vdwg.mxu0
        %v2236 = vand.u32 %v1623, 4294901760
        %2237 = vmatprep.subr.mxu0 %v2236
        %v2238 = vand.u32 %v1622, 4294901760
        %2239 = vmatpush1.msra.mxu0 %v2238
        %v2240 = vand.u32 %v1626, 4294901760
        %2241 = vmatprep.subr.mxu0 %v2240
        %v2242 = vand.u32 %v1625, 4294901760
        %2243 = vmatpush1.msra.mxu0 %v2242
        %v2244 = vand.u32 %v1629, 4294901760
        %2245 = vmatprep.subr.mxu0 %v2244
        %v2246 = vand.u32 %v1628, 4294901760
        %2247 = vmatpush1.msra.mxu0 %v2246
        %v2248 = vand.u32 %v1632, 4294901760
        %2249 = vmatprep.subr.mxu0 %v2248
        %v2250 = vand.u32 %v1631, 4294901760
        %2251 = vmatpush1.msra.mxu0 %v2250
        %v2252 = vand.u32 %v1635, 4294901760
        %2253 = vmatprep.subr.mxu0 %v2252
        %v2254 = vand.u32 %v1634, 4294901760
        %2255 = vmatpush1.msra.mxu0 %v2254
        %v2256 = vand.u32 %v1638, 4294901760
        %2257 = vmatprep.subr.mxu0 %v2256
        %v2258 = vand.u32 %v1637, 4294901760
        %2259 = vmatpush1.msra.mxu0 %v2258
        %v2260 = vand.u32 %v1641, 4294901760
        %2261 = vmatprep.subr.mxu0 %v2260
        %v2262 = vand.u32 %v1640, 4294901760
        %2263 = vmatpush1.msra.mxu0 %v2262
        %v2264 = vand.u32 %v1644, 4294901760
        %2265 = vmatprep.subr.mxu0 %v2264
        %v2266 = vand.u32 %v1643, 4294901760
        %2267 = vmatpush1.msra.mxu0 %v2266
        %v2268 = vand.u32 %v1647, 4294901760
        %2269 = vmatprep.subr.mxu0 %v2268
        %v2270 = vand.u32 %v1646, 4294901760
        %2271 = vmatpush1.msra.mxu0 %v2270
        %2272 = vmatprep.subr.mxu0 0.0
        %2273 = vmatpush1.msra.mxu0 0.0
        %2274 = vmatprep.subr.mxu0 0.0
        %2275 = vmatpush1.msra.mxu0 0.0
        %2276 = vmatprep.subr.mxu0 0.0
        %2277 = vmatpush1.msra.mxu0 0.0
        %2278 = vmatprep.subr.mxu0 0.0
        %2279 = vmatpush1.msra.mxu0 0.0
        %2280 = vmatprep.subr.mxu0 0.0
        %2281 = vmatpush1.msra.mxu0 0.0
        %2282 = vmatprep.subr.mxu0 0.0
        %2283 = vmatpush1.msra.mxu0 0.0
        %2284 = vmatprep.subr.mxu0 0.0
        %2285 = vmatpush1.msra.mxu0 0.0
        %2286 = vmatprep.subr.mxu0 0.0
        %2287 = vmatpush1.msra.mxu0 0.0
        %2288 = vmatprep.subr.mxu0 0.0
        %2289 = vmatpush1.msra.mxu0 0.0
        %2290 = vmatprep.subr.mxu0 0.0
        %2291 = vmatpush1.msra.mxu0 0.0
        %2292 = vmatprep.subr.mxu0 0.0
        %2293 = vmatpush1.msra.mxu0 0.0
        %2294 = vmatprep.subr.mxu0 0.0
        %2295 = vmatpush1.msra.mxu0 0.0
        %2296 = vmatprep.subr.mxu0 0.0
        %2297 = vmatpush1.msra.mxu0 0.0
        %2298 = vmatprep.subr.mxu0 0.0
        %2299 = vmatpush1.msra.mxu0 0.0
        %2300 = vmatprep.subr.mxu0 0.0
        %2301 = vmatpush1.msra.mxu0 0.0
        %2302 = vmatprep.subr.mxu0 0.0
        %2303 = vmatpush1.msra.mxu0 0.0
        %2304 = vmatprep.subr.mxu0 0.0
        %2305 = vmatpush1.msra.mxu0 0.0
        %2306 = vmatprep.subr.mxu0 0.0
        %2307 = vmatpush1.msra.mxu0 0.0
        %2308 = vmatprep.subr.mxu0 0.0
        %2309 = vmatpush1.msra.mxu0 0.0
        %2310 = vmatprep.subr.mxu0 0.0
        %2311 = vmatpush1.msra.mxu0 0.0
        %2312 = vmatprep.subr.mxu0 0.0
        %2313 = vmatpush1.msra.mxu0 0.0
        %2314 = vmatprep.subr.mxu0 0.0
        %2315 = vmatpush1.msra.mxu0 0.0
        %2316 = vmatprep.subr.mxu0 0.0
        %2317 = vmatpush1.msra.mxu0 0.0
        %2318 = vmatprep.mubr.f32.mxu0 0.0
        %v2319 = vand.u32 %v1651, 4294901760
        %2320 = vmatmul.mubr.f32.gmra.mrb[0].mxu0 %v2319
        %v2321 = vpop.f32.mrb[0].mxu0
        %v2322 = vadd.f32 %v2232, %v2321
        %v2323 = vpop.f32.mrb[0].mxu0
        %v2324 = vadd.f32 %v2234, %v2323
        %2325 = vdwg.mxu0
        %2326 = vmatprep.subr.mxu0 0.0
        %v2327 = vand.u32 %v1624, 4294901760
        %2328 = vmatpush1.msra.mxu0 %v2327
        %2329 = vmatprep.subr.mxu0 0.0
        %v2330 = vand.u32 %v1627, 4294901760
        %2331 = vmatpush1.msra.mxu0 %v2330
        %2332 = vmatprep.subr.mxu0 0.0
        %v2333 = vand.u32 %v1630, 4294901760
        %2334 = vmatpush1.msra.mxu0 %v2333
        %2335 = vmatprep.subr.mxu0 0.0
        %v2336 = vand.u32 %v1633, 4294901760
        %2337 = vmatpush1.msra.mxu0 %v2336
        %2338 = vmatprep.subr.mxu0 0.0
        %v2339 = vand.u32 %v1636, 4294901760
        %2340 = vmatpush1.msra.mxu0 %v2339
        %2341 = vmatprep.subr.mxu0 0.0
        %v2342 = vand.u32 %v1639, 4294901760
        %2343 = vmatpush1.msra.mxu0 %v2342
        %2344 = vmatprep.subr.mxu0 0.0
        %v2345 = vand.u32 %v1642, 4294901760
        %2346 = vmatpush1.msra.mxu0 %v2345
        %2347 = vmatprep.subr.mxu0 0.0
        %v2348 = vand.u32 %v1645, 4294901760
        %2349 = vmatpush1.msra.mxu0 %v2348
        %2350 = vmatprep.subr.mxu0 0.0
        %v2351 = vand.u32 %v1648, 4294901760
        %2352 = vmatpush1.msra.mxu0 %v2351
        %2353 = vmatprep.subr.mxu0 0.0
        %2354 = vmatpush1.msra.mxu0 0.0
        %2355 = vmatprep.subr.mxu0 0.0
        %2356 = vmatpush1.msra.mxu0 0.0
        %2357 = vmatprep.subr.mxu0 0.0
        %2358 = vmatpush1.msra.mxu0 0.0
        %2359 = vmatprep.subr.mxu0 0.0
        %2360 = vmatpush1.msra.mxu0 0.0
        %2361 = vmatprep.subr.mxu0 0.0
        %2362 = vmatpush1.msra.mxu0 0.0
        %2363 = vmatprep.subr.mxu0 0.0
        %2364 = vmatpush1.msra.mxu0 0.0
        %2365 = vmatprep.subr.mxu0 0.0
        %2366 = vmatpush1.msra.mxu0 0.0
        %2367 = vmatprep.subr.mxu0 0.0
        %2368 = vmatpush1.msra.mxu0 0.0
        %2369 = vmatprep.subr.mxu0 0.0
        %2370 = vmatpush1.msra.mxu0 0.0
        %2371 = vmatprep.subr.mxu0 0.0
        %2372 = vmatpush1.msra.mxu0 0.0
        %2373 = vmatprep.subr.mxu0 0.0
        %2374 = vmatpush1.msra.mxu0 0.0
        %2375 = vmatprep.subr.mxu0 0.0
        %2376 = vmatpush1.msra.mxu0 0.0
        %2377 = vmatprep.subr.mxu0 0.0
        %2378 = vmatpush1.msra.mxu0 0.0
        %2379 = vmatprep.subr.mxu0 0.0
        %2380 = vmatpush1.msra.mxu0 0.0
        %2381 = vmatprep.subr.mxu0 0.0
        %2382 = vmatpush1.msra.mxu0 0.0
        %2383 = vmatprep.subr.mxu0 0.0
        %2384 = vmatpush1.msra.mxu0 0.0
        %2385 = vmatprep.subr.mxu0 0.0
        %2386 = vmatpush1.msra.mxu0 0.0
        %2387 = vmatprep.subr.mxu0 0.0
        %2388 = vmatpush1.msra.mxu0 0.0
        %2389 = vmatprep.subr.mxu0 0.0
        %2390 = vmatpush1.msra.mxu0 0.0
        %2391 = vmatprep.subr.mxu0 0.0
        %2392 = vmatpush1.msra.mxu0 0.0
        %2393 = vmatprep.subr.mxu0 0.0
        %2394 = vmatpush1.msra.mxu0 0.0
        %2395 = vmatprep.subr.mxu0 0.0
        %2396 = vmatpush1.msra.mxu0 0.0
        %2397 = vmatprep.subr.mxu0 0.0
        %2398 = vmatpush1.msra.mxu0 0.0
        %2399 = vmatprep.mubr.f32.mxu0 0.0
        %v2400 = vand.u32 %v1651, 4294901760
        %v2401 = vsub.f32 %v1651, %v2400
        %v2402 = vand.u32 %v2401, 4294901760
        %v2403 = vsub.f32 %v2401, %v2402
        %v2404 = vand.u32 %v2403, 4294901760
        %2405 = vmatmul.mubr.f32.gmra.mrb[0].mxu0 %v2404
        %v2406 = vpop.f32.mrb[0].mxu0
        %v2407 = vadd.f32 0.0, %v2406
        %v2408 = vpop.f32.mrb[0].mxu0
        %2409 = vdwg.mxu0
        %2410 = vmatprep.subr.mxu0 0.0
        %v2411 = vand.u32 %v1624, 4294901760
        %v2412 = vsub.f32 %v1624, %v2411
        %v2413 = vand.u32 %v2412, 4294901760
        %v2414 = vsub.f32 %v2412, %v2413
        %v2415 = vand.u32 %v2414, 4294901760
        %2416 = vmatpush1.msra.mxu0 %v2415
        %2417 = vmatprep.subr.mxu0 0.0
        %v2418 = vand.u32 %v1627, 4294901760
        %v2419 = vsub.f32 %v1627, %v2418
        %v2420 = vand.u32 %v2419, 4294901760
        %v2421 = vsub.f32 %v2419, %v2420
        %v2422 = vand.u32 %v2421, 4294901760
        %2423 = vmatpush1.msra.mxu0 %v2422
        %2424 = vmatprep.subr.mxu0 0.0
        %v2425 = vand.u32 %v1630, 4294901760
        %v2426 = vsub.f32 %v1630, %v2425
        %v2427 = vand.u32 %v2426, 4294901760
        %v2428 = vsub.f32 %v2426, %v2427
        %v2429 = vand.u32 %v2428, 4294901760
        %2430 = vmatpush1.msra.mxu0 %v2429
        %2431 = vmatprep.subr.mxu0 0.0
        %v2432 = vand.u32 %v1633, 4294901760
        %v2433 = vsub.f32 %v1633, %v2432
        %v2434 = vand.u32 %v2433, 4294901760
        %v2435 = vsub.f32 %v2433, %v2434
        %v2436 = vand.u32 %v2435, 4294901760
        %2437 = vmatpush1.msra.mxu0 %v2436
        %2438 = vmatprep.subr.mxu0 0.0
        %v2439 = vand.u32 %v1636, 4294901760
        %v2440 = vsub.f32 %v1636, %v2439
        %v2441 = vand.u32 %v2440, 4294901760
        %v2442 = vsub.f32 %v2440, %v2441
        %v2443 = vand.u32 %v2442, 4294901760
        %2444 = vmatpush1.msra.mxu0 %v2443
        %2445 = vmatprep.subr.mxu0 0.0
        %v2446 = vand.u32 %v1639, 4294901760
        %v2447 = vsub.f32 %v1639, %v2446
        %v2448 = vand.u32 %v2447, 4294901760
        %v2449 = vsub.f32 %v2447, %v2448
        %v2450 = vand.u32 %v2449, 4294901760
        %2451 = vmatpush1.msra.mxu0 %v2450
        %2452 = vmatprep.subr.mxu0 0.0
        %v2453 = vand.u32 %v1642, 4294901760
        %v2454 = vsub.f32 %v1642, %v2453
        %v2455 = vand.u32 %v2454, 4294901760
        %v2456 = vsub.f32 %v2454, %v2455
        %v2457 = vand.u32 %v2456, 4294901760
        %2458 = vmatpush1.msra.mxu0 %v2457
        %2459 = vmatprep.subr.mxu0 0.0
        %v2460 = vand.u32 %v1645, 4294901760
        %v2461 = vsub.f32 %v1645, %v2460
        %v2462 = vand.u32 %v2461, 4294901760
        %v2463 = vsub.f32 %v2461, %v2462
        %v2464 = vand.u32 %v2463, 4294901760
        %2465 = vmatpush1.msra.mxu0 %v2464
        %2466 = vmatprep.subr.mxu0 0.0
        %v2467 = vand.u32 %v1648, 4294901760
        %v2468 = vsub.f32 %v1648, %v2467
        %v2469 = vand.u32 %v2468, 4294901760
        %v2470 = vsub.f32 %v2468, %v2469
        %v2471 = vand.u32 %v2470, 4294901760
        %2472 = vmatpush1.msra.mxu0 %v2471
        %2473 = vmatprep.subr.mxu0 0.0
        %2474 = vmatpush1.msra.mxu0 0.0
        %2475 = vmatprep.subr.mxu0 0.0
        %2476 = vmatpush1.msra.mxu0 0.0
        %2477 = vmatprep.subr.mxu0 0.0
        %2478 = vmatpush1.msra.mxu0 0.0
        %2479 = vmatprep.subr.mxu0 0.0
        %2480 = vmatpush1.msra.mxu0 0.0
        %2481 = vmatprep.subr.mxu0 0.0
        %2482 = vmatpush1.msra.mxu0 0.0
        %2483 = vmatprep.subr.mxu0 0.0
        %2484 = vmatpush1.msra.mxu0 0.0
        %2485 = vmatprep.subr.mxu0 0.0
        %2486 = vmatpush1.msra.mxu0 0.0
        %2487 = vmatprep.subr.mxu0 0.0
        %2488 = vmatpush1.msra.mxu0 0.0
        %2489 = vmatprep.subr.mxu0 0.0
        %2490 = vmatpush1.msra.mxu0 0.0
        %2491 = vmatprep.subr.mxu0 0.0
        %2492 = vmatpush1.msra.mxu0 0.0
        %2493 = vmatprep.subr.mxu0 0.0
        %2494 = vmatpush1.msra.mxu0 0.0
        %2495 = vmatprep.subr.mxu0 0.0
        %2496 = vmatpush1.msra.mxu0 0.0
        %2497 = vmatprep.subr.mxu0 0.0
        %2498 = vmatpush1.msra.mxu0 0.0
        %2499 = vmatprep.subr.mxu0 0.0
        %2500 = vmatpush1.msra.mxu0 0.0
        %2501 = vmatprep.subr.mxu0 0.0
        %2502 = vmatpush1.msra.mxu0 0.0
        %2503 = vmatprep.subr.mxu0 0.0
        %2504 = vmatpush1.msra.mxu0 0.0
        %2505 = vmatprep.subr.mxu0 0.0
        %2506 = vmatpush1.msra.mxu0 0.0
        %2507 = vmatprep.subr.mxu0 0.0
        %2508 = vmatpush1.msra.mxu0 0.0
        %2509 = vmatprep.subr.mxu0 0.0
        %2510 = vmatpush1.msra.mxu0 0.0
        %2511 = vmatprep.subr.mxu0 0.0
        %2512 = vmatpush1.msra.mxu0 0.0
        %2513 = vmatprep.subr.mxu0 0.0
        %2514 = vmatpush1.msra.mxu0 0.0
        %2515 = vmatprep.subr.mxu0 0.0
        %2516 = vmatpush1.msra.mxu0 0.0
        %2517 = vmatprep.subr.mxu0 0.0
        %2518 = vmatpush1.msra.mxu0 0.0
        %2519 = vmatprep.mubr.f32.mxu0 0.0
        %v2520 = vand.u32 %v1651, 4294901760
        %2521 = vmatmul.mubr.f32.gmra.mrb[0].mxu0 %v2520
        %v2522 = vpop.f32.mrb[0].mxu0
        %v2523 = vadd.f32 %v2407, %v2522
        %v2524 = vpop.f32.mrb[0].mxu0
        %2525 = vdwg.mxu0
        %2526 = vmatprep.subr.mxu0 0.0
        %v2527 = vand.u32 %v1624, 4294901760
        %v2528 = vsub.f32 %v1624, %v2527
        %2529 = vmatpush1.msra.mxu0 %v2528
        %2530 = vmatprep.subr.mxu0 0.0
        %v2531 = vand.u32 %v1627, 4294901760
        %v2532 = vsub.f32 %v1627, %v2531
        %2533 = vmatpush1.msra.mxu0 %v2532
        %2534 = vmatprep.subr.mxu0 0.0
        %v2535 = vand.u32 %v1630, 4294901760
        %v2536 = vsub.f32 %v1630, %v2535
        %2537 = vmatpush1.msra.mxu0 %v2536
        %2538 = vmatprep.subr.mxu0 0.0
        %v2539 = vand.u32 %v1633, 4294901760
        %v2540 = vsub.f32 %v1633, %v2539
        %2541 = vmatpush1.msra.mxu0 %v2540
        %2542 = vmatprep.subr.mxu0 0.0
        %v2543 = vand.u32 %v1636, 4294901760
        %v2544 = vsub.f32 %v1636, %v2543
        %2545 = vmatpush1.msra.mxu0 %v2544
        %2546 = vmatprep.subr.mxu0 0.0
        %v2547 = vand.u32 %v1639, 4294901760
        %v2548 = vsub.f32 %v1639, %v2547
        %2549 = vmatpush1.msra.mxu0 %v2548
        %2550 = vmatprep.subr.mxu0 0.0
        %v2551 = vand.u32 %v1642, 4294901760
        %v2552 = vsub.f32 %v1642, %v2551
        %2553 = vmatpush1.msra.mxu0 %v2552
        %2554 = vmatprep.subr.mxu0 0.0
        %v2555 = vand.u32 %v1645, 4294901760
        %v2556 = vsub.f32 %v1645, %v2555
        %2557 = vmatpush1.msra.mxu0 %v2556
        %2558 = vmatprep.subr.mxu0 0.0
        %v2559 = vand.u32 %v1648, 4294901760
        %v2560 = vsub.f32 %v1648, %v2559
        %2561 = vmatpush1.msra.mxu0 %v2560
        %2562 = vmatprep.subr.mxu0 0.0
        %2563 = vmatpush1.msra.mxu0 0.0
        %2564 = vmatprep.subr.mxu0 0.0
        %2565 = vmatpush1.msra.mxu0 0.0
        %2566 = vmatprep.subr.mxu0 0.0
        %2567 = vmatpush1.msra.mxu0 0.0
        %2568 = vmatprep.subr.mxu0 0.0
        %2569 = vmatpush1.msra.mxu0 0.0
        %2570 = vmatprep.subr.mxu0 0.0
        %2571 = vmatpush1.msra.mxu0 0.0
        %2572 = vmatprep.subr.mxu0 0.0
        %2573 = vmatpush1.msra.mxu0 0.0
        %2574 = vmatprep.subr.mxu0 0.0
        %2575 = vmatpush1.msra.mxu0 0.0
        %2576 = vmatprep.subr.mxu0 0.0
        %2577 = vmatpush1.msra.mxu0 0.0
        %2578 = vmatprep.subr.mxu0 0.0
        %2579 = vmatpush1.msra.mxu0 0.0
        %2580 = vmatprep.subr.mxu0 0.0
        %2581 = vmatpush1.msra.mxu0 0.0
        %2582 = vmatprep.subr.mxu0 0.0
        %2583 = vmatpush1.msra.mxu0 0.0
        %2584 = vmatprep.subr.mxu0 0.0
        %2585 = vmatpush1.msra.mxu0 0.0
        %2586 = vmatprep.subr.mxu0 0.0
        %2587 = vmatpush1.msra.mxu0 0.0
        %2588 = vmatprep.subr.mxu0 0.0
        %2589 = vmatpush1.msra.mxu0 0.0
        %2590 = vmatprep.subr.mxu0 0.0
        %2591 = vmatpush1.msra.mxu0 0.0
        %2592 = vmatprep.subr.mxu0 0.0
        %2593 = vmatpush1.msra.mxu0 0.0
        %2594 = vmatprep.subr.mxu0 0.0
        %2595 = vmatpush1.msra.mxu0 0.0
        %2596 = vmatprep.subr.mxu0 0.0
        %2597 = vmatpush1.msra.mxu0 0.0
        %2598 = vmatprep.subr.mxu0 0.0
        %2599 = vmatpush1.msra.mxu0 0.0
        %2600 = vmatprep.subr.mxu0 0.0
        %2601 = vmatpush1.msra.mxu0 0.0
        %2602 = vmatprep.subr.mxu0 0.0
        %2603 = vmatpush1.msra.mxu0 0.0
        %2604 = vmatprep.subr.mxu0 0.0
        %2605 = vmatpush1.msra.mxu0 0.0
        %2606 = vmatprep.subr.mxu0 0.0
        %2607 = vmatpush1.msra.mxu0 0.0
        %2608 = vmatprep.mubr.f32.mxu0 0.0
        %v2609 = vand.u32 %v1651, 4294901760
        %v2610 = vsub.f32 %v1651, %v2609
        %2611 = vmatmul.mubr.f32.gmra.mrb[0].mxu0 %v2610
        %v2612 = vpop.f32.mrb[0].mxu0
        %v2613 = vadd.f32 %v2523, %v2612
        %v2614 = vpop.f32.mrb[0].mxu0
        %2615 = vdwg.mxu0
        %2616 = vmatprep.subr.mxu0 0.0
        %v2617 = vand.u32 %v1624, 4294901760
        %2618 = vmatpush1.msra.mxu0 %v2617
        %2619 = vmatprep.subr.mxu0 0.0
        %v2620 = vand.u32 %v1627, 4294901760
        %2621 = vmatpush1.msra.mxu0 %v2620
        %2622 = vmatprep.subr.mxu0 0.0
        %v2623 = vand.u32 %v1630, 4294901760
        %2624 = vmatpush1.msra.mxu0 %v2623
        %2625 = vmatprep.subr.mxu0 0.0
        %v2626 = vand.u32 %v1633, 4294901760
        %2627 = vmatpush1.msra.mxu0 %v2626
        %2628 = vmatprep.subr.mxu0 0.0
        %v2629 = vand.u32 %v1636, 4294901760
        %2630 = vmatpush1.msra.mxu0 %v2629
        %2631 = vmatprep.subr.mxu0 0.0
        %v2632 = vand.u32 %v1639, 4294901760
        %2633 = vmatpush1.msra.mxu0 %v2632
        %2634 = vmatprep.subr.mxu0 0.0
        %v2635 = vand.u32 %v1642, 4294901760
        %2636 = vmatpush1.msra.mxu0 %v2635
        %2637 = vmatprep.subr.mxu0 0.0
        %v2638 = vand.u32 %v1645, 4294901760
        %2639 = vmatpush1.msra.mxu0 %v2638
        %2640 = vmatprep.subr.mxu0 0.0
        %v2641 = vand.u32 %v1648, 4294901760
        %2642 = vmatpush1.msra.mxu0 %v2641
        %2643 = vmatprep.subr.mxu0 0.0
        %2644 = vmatpush1.msra.mxu0 0.0
        %2645 = vmatprep.subr.mxu0 0.0
        %2646 = vmatpush1.msra.mxu0 0.0
        %2647 = vmatprep.subr.mxu0 0.0
        %2648 = vmatpush1.msra.mxu0 0.0
        %2649 = vmatprep.subr.mxu0 0.0
        %2650 = vmatpush1.msra.mxu0 0.0
        %2651 = vmatprep.subr.mxu0 0.0
        %2652 = vmatpush1.msra.mxu0 0.0
        %2653 = vmatprep.subr.mxu0 0.0
        %2654 = vmatpush1.msra.mxu0 0.0
        %2655 = vmatprep.subr.mxu0 0.0
        %2656 = vmatpush1.msra.mxu0 0.0
        %2657 = vmatprep.subr.mxu0 0.0
        %2658 = vmatpush1.msra.mxu0 0.0
        %2659 = vmatprep.subr.mxu0 0.0
        %2660 = vmatpush1.msra.mxu0 0.0
        %2661 = vmatprep.subr.mxu0 0.0
        %2662 = vmatpush1.msra.mxu0 0.0
        %2663 = vmatprep.subr.mxu0 0.0
        %2664 = vmatpush1.msra.mxu0 0.0
        %2665 = vmatprep.subr.mxu0 0.0
        %2666 = vmatpush1.msra.mxu0 0.0
        %2667 = vmatprep.subr.mxu0 0.0
        %2668 = vmatpush1.msra.mxu0 0.0
        %2669 = vmatprep.subr.mxu0 0.0
        %2670 = vmatpush1.msra.mxu0 0.0
        %2671 = vmatprep.subr.mxu0 0.0
        %2672 = vmatpush1.msra.mxu0 0.0
        %2673 = vmatprep.subr.mxu0 0.0
        %2674 = vmatpush1.msra.mxu0 0.0
        %2675 = vmatprep.subr.mxu0 0.0
        %2676 = vmatpush1.msra.mxu0 0.0
        %2677 = vmatprep.subr.mxu0 0.0
        %2678 = vmatpush1.msra.mxu0 0.0
        %2679 = vmatprep.subr.mxu0 0.0
        %2680 = vmatpush1.msra.mxu0 0.0
        %2681 = vmatprep.subr.mxu0 0.0
        %2682 = vmatpush1.msra.mxu0 0.0
        %2683 = vmatprep.subr.mxu0 0.0
        %2684 = vmatpush1.msra.mxu0 0.0
        %2685 = vmatprep.subr.mxu0 0.0
        %2686 = vmatpush1.msra.mxu0 0.0
        %2687 = vmatprep.subr.mxu0 0.0
        %2688 = vmatpush1.msra.mxu0 0.0
        %2689 = vmatprep.mubr.f32.mxu0 0.0
        %v2690 = vand.u32 %v1651, 4294901760
        %v2691 = vsub.f32 %v1651, %v2690
        %v2692 = vand.u32 %v2691, 4294901760
        %2693 = vmatmul.mubr.f32.gmra.mrb[0].mxu0 %v2692
        %v2694 = vpop.f32.mrb[0].mxu0
        %v2695 = vadd.f32 %v2613, %v2694
        %v2696 = vpop.f32.mrb[0].mxu0
        %2697 = vdwg.mxu0
        %2698 = vmatprep.subr.mxu0 0.0
        %v2699 = vand.u32 %v1624, 4294901760
        %v2700 = vsub.f32 %v1624, %v2699
        %v2701 = vand.u32 %v2700, 4294901760
        %2702 = vmatpush1.msra.mxu0 %v2701
        %2703 = vmatprep.subr.mxu0 0.0
        %v2704 = vand.u32 %v1627, 4294901760
        %v2705 = vsub.f32 %v1627, %v2704
        %v2706 = vand.u32 %v2705, 4294901760
        %2707 = vmatpush1.msra.mxu0 %v2706
        %2708 = vmatprep.subr.mxu0 0.0
        %v2709 = vand.u32 %v1630, 4294901760
        %v2710 = vsub.f32 %v1630, %v2709
        %v2711 = vand.u32 %v2710, 4294901760
        %2712 = vmatpush1.msra.mxu0 %v2711
        %2713 = vmatprep.subr.mxu0 0.0
        %v2714 = vand.u32 %v1633, 4294901760
        %v2715 = vsub.f32 %v1633, %v2714
        %v2716 = vand.u32 %v2715, 4294901760
        %2717 = vmatpush1.msra.mxu0 %v2716
        %2718 = vmatprep.subr.mxu0 0.0
        %v2719 = vand.u32 %v1636, 4294901760
        %v2720 = vsub.f32 %v1636, %v2719
        %v2721 = vand.u32 %v2720, 4294901760
        %2722 = vmatpush1.msra.mxu0 %v2721
        %2723 = vmatprep.subr.mxu0 0.0
        %v2724 = vand.u32 %v1639, 4294901760
        %v2725 = vsub.f32 %v1639, %v2724
        %v2726 = vand.u32 %v2725, 4294901760
        %2727 = vmatpush1.msra.mxu0 %v2726
        %2728 = vmatprep.subr.mxu0 0.0
        %v2729 = vand.u32 %v1642, 4294901760
        %v2730 = vsub.f32 %v1642, %v2729
        %v2731 = vand.u32 %v2730, 4294901760
        %2732 = vmatpush1.msra.mxu0 %v2731
        %2733 = vmatprep.subr.mxu0 0.0
        %v2734 = vand.u32 %v1645, 4294901760
        %v2735 = vsub.f32 %v1645, %v2734
        %v2736 = vand.u32 %v2735, 4294901760
        %2737 = vmatpush1.msra.mxu0 %v2736
        %2738 = vmatprep.subr.mxu0 0.0
        %v2739 = vand.u32 %v1648, 4294901760
        %v2740 = vsub.f32 %v1648, %v2739
        %v2741 = vand.u32 %v2740, 4294901760
        %2742 = vmatpush1.msra.mxu0 %v2741
        %2743 = vmatprep.subr.mxu0 0.0
        %2744 = vmatpush1.msra.mxu0 0.0
        %2745 = vmatprep.subr.mxu0 0.0
        %2746 = vmatpush1.msra.mxu0 0.0
        %2747 = vmatprep.subr.mxu0 0.0
        %2748 = vmatpush1.msra.mxu0 0.0
        %2749 = vmatprep.subr.mxu0 0.0
        %2750 = vmatpush1.msra.mxu0 0.0
        %2751 = vmatprep.subr.mxu0 0.0
        %2752 = vmatpush1.msra.mxu0 0.0
        %2753 = vmatprep.subr.mxu0 0.0
        %2754 = vmatpush1.msra.mxu0 0.0
        %2755 = vmatprep.subr.mxu0 0.0
        %2756 = vmatpush1.msra.mxu0 0.0
        %2757 = vmatprep.subr.mxu0 0.0
        %2758 = vmatpush1.msra.mxu0 0.0
        %2759 = vmatprep.subr.mxu0 0.0
        %2760 = vmatpush1.msra.mxu0 0.0
        %2761 = vmatprep.subr.mxu0 0.0
        %2762 = vmatpush1.msra.mxu0 0.0
        %2763 = vmatprep.subr.mxu0 0.0
        %2764 = vmatpush1.msra.mxu0 0.0
        %2765 = vmatprep.subr.mxu0 0.0
        %2766 = vmatpush1.msra.mxu0 0.0
        %2767 = vmatprep.subr.mxu0 0.0
        %2768 = vmatpush1.msra.mxu0 0.0
        %2769 = vmatprep.subr.mxu0 0.0
        %2770 = vmatpush1.msra.mxu0 0.0
        %2771 = vmatprep.subr.mxu0 0.0
        %2772 = vmatpush1.msra.mxu0 0.0
        %2773 = vmatprep.subr.mxu0 0.0
        %2774 = vmatpush1.msra.mxu0 0.0
        %2775 = vmatprep.subr.mxu0 0.0
        %2776 = vmatpush1.msra.mxu0 0.0
        %2777 = vmatprep.subr.mxu0 0.0
        %2778 = vmatpush1.msra.mxu0 0.0
        %2779 = vmatprep.subr.mxu0 0.0
        %2780 = vmatpush1.msra.mxu0 0.0
        %2781 = vmatprep.subr.mxu0 0.0
        %2782 = vmatpush1.msra.mxu0 0.0
        %2783 = vmatprep.subr.mxu0 0.0
        %2784 = vmatpush1.msra.mxu0 0.0
        %2785 = vmatprep.subr.mxu0 0.0
        %2786 = vmatpush1.msra.mxu0 0.0
        %2787 = vmatprep.subr.mxu0 0.0
        %2788 = vmatpush1.msra.mxu0 0.0
        %2789 = vmatprep.mubr.f32.mxu0 0.0
        %v2790 = vand.u32 %v1651, 4294901760
        %2791 = vmatmul.mubr.f32.gmra.mrb[0].mxu0 %v2790
        %v2792 = vpop.f32.mrb[0].mxu0
        %v2793 = vadd.f32 %v2695, %v2792
        %v2794 = vpop.f32.mrb[0].mxu0
        %2795 = vdwg.mxu0
        %2796 = vmatprep.subr.mxu0 0.0
        %v2797 = vand.u32 %v1624, 4294901760
        %2798 = vmatpush1.msra.mxu0 %v2797
        %2799 = vmatprep.subr.mxu0 0.0
        %v2800 = vand.u32 %v1627, 4294901760
        %2801 = vmatpush1.msra.mxu0 %v2800
        %2802 = vmatprep.subr.mxu0 0.0
        %v2803 = vand.u32 %v1630, 4294901760
        %2804 = vmatpush1.msra.mxu0 %v2803
        %2805 = vmatprep.subr.mxu0 0.0
        %v2806 = vand.u32 %v1633, 4294901760
        %2807 = vmatpush1.msra.mxu0 %v2806
        %2808 = vmatprep.subr.mxu0 0.0
        %v2809 = vand.u32 %v1636, 4294901760
        %2810 = vmatpush1.msra.mxu0 %v2809
        %2811 = vmatprep.subr.mxu0 0.0
        %v2812 = vand.u32 %v1639, 4294901760
        %2813 = vmatpush1.msra.mxu0 %v2812
        %2814 = vmatprep.subr.mxu0 0.0
        %v2815 = vand.u32 %v1642, 4294901760
        %2816 = vmatpush1.msra.mxu0 %v2815
        %2817 = vmatprep.subr.mxu0 0.0
        %v2818 = vand.u32 %v1645, 4294901760
        %2819 = vmatpush1.msra.mxu0 %v2818
        %2820 = vmatprep.subr.mxu0 0.0
        %v2821 = vand.u32 %v1648, 4294901760
        %2822 = vmatpush1.msra.mxu0 %v2821
        %2823 = vmatprep.subr.mxu0 0.0
        %2824 = vmatpush1.msra.mxu0 0.0
        %2825 = vmatprep.subr.mxu0 0.0
        %2826 = vmatpush1.msra.mxu0 0.0
        %2827 = vmatprep.subr.mxu0 0.0
        %2828 = vmatpush1.msra.mxu0 0.0
        %2829 = vmatprep.subr.mxu0 0.0
        %2830 = vmatpush1.msra.mxu0 0.0
        %2831 = vmatprep.subr.mxu0 0.0
        %2832 = vmatpush1.msra.mxu0 0.0
        %2833 = vmatprep.subr.mxu0 0.0
        %2834 = vmatpush1.msra.mxu0 0.0
        %2835 = vmatprep.subr.mxu0 0.0
        %2836 = vmatpush1.msra.mxu0 0.0
        %2837 = vmatprep.subr.mxu0 0.0
        %2838 = vmatpush1.msra.mxu0 0.0
        %2839 = vmatprep.subr.mxu0 0.0
        %2840 = vmatpush1.msra.mxu0 0.0
        %2841 = vmatprep.subr.mxu0 0.0
        %2842 = vmatpush1.msra.mxu0 0.0
        %2843 = vmatprep.subr.mxu0 0.0
        %2844 = vmatpush1.msra.mxu0 0.0
        %2845 = vmatprep.subr.mxu0 0.0
        %2846 = vmatpush1.msra.mxu0 0.0
        %2847 = vmatprep.subr.mxu0 0.0
        %2848 = vmatpush1.msra.mxu0 0.0
        %2849 = vmatprep.subr.mxu0 0.0
        %2850 = vmatpush1.msra.mxu0 0.0
        %2851 = vmatprep.subr.mxu0 0.0
        %2852 = vmatpush1.msra.mxu0 0.0
        %2853 = vmatprep.subr.mxu0 0.0
        %2854 = vmatpush1.msra.mxu0 0.0
        %2855 = vmatprep.subr.mxu0 0.0
        %2856 = vmatpush1.msra.mxu0 0.0
        %2857 = vmatprep.subr.mxu0 0.0
        %2858 = vmatpush1.msra.mxu0 0.0
        %2859 = vmatprep.subr.mxu0 0.0
        %2860 = vmatpush1.msra.mxu0 0.0
        %2861 = vmatprep.subr.mxu0 0.0
        %2862 = vmatpush1.msra.mxu0 0.0
        %2863 = vmatprep.subr.mxu0 0.0
        %2864 = vmatpush1.msra.mxu0 0.0
        %2865 = vmatprep.subr.mxu0 0.0
        %2866 = vmatpush1.msra.mxu0 0.0
        %2867 = vmatprep.subr.mxu0 0.0
        %2868 = vmatpush1.msra.mxu0 0.0
        %2869 = vmatprep.mubr.f32.mxu0 0.0
        %v2870 = vand.u32 %v1651, 4294901760
        %2871 = vmatmul.mubr.f32.gmra.mrb[0].mxu0 %v2870
        %v2872 = vpop.f32.mrb[0].mxu0
        %v2873 = vadd.f32 %v2793, %v2872
        %v2874 = vpop.f32.mrb[0].mxu0
        %2875 = vdwg.mxu0
        %2879 = vrot.lane.b32.xlu0 %v2322, 36
        %v2880 = vpop.permute.xlu0 %2879
        %2881 = vrot.lane.b32.xlu0 %v2324, 36
        %v2882 = vpop.permute.xlu0 %2881
        %2883 = vrot.lane.b32.xlu0 %v2873, 36
        %v2884 = vpop.permute.xlu0 %2883
        %v2885 = vsel %vm268, %v2880, %v2882
        %v2886 = vsel %vm268, %v2882, %v2884
        %v2891 = vmul.f32 %v251, %v2880
        %v2892 = vmul.f32 %v252, %v2885
        %v2893 = vmul.f32 %v253, %v2886
        %v2894 = vmul.f32 %v254, %v2884
        %v2895 = vrot.slane %v2322, 4
        %v2896 = vrot.slane %v2324, 4
        %v2897 = vrot.slane %v2873, 4
        %2898 = vrot.lane.b32.xlu0 %v2895, 36
        %v2899 = vpop.permute.xlu0 %2898
        %2900 = vrot.lane.b32.xlu0 %v2896, 36
        %v2901 = vpop.permute.xlu0 %2900
        %2902 = vrot.lane.b32.xlu0 %v2897, 36
        %v2903 = vpop.permute.xlu0 %2902
        %v2904 = vsel %vm268, %v2899, %v2901
        %v2905 = vsel %vm268, %v2901, %v2903
        %v2910 = vsub.f32 %v2891, %v2899
        %v2911 = vsub.f32 %v2892, %v2904
        %v2912 = vsub.f32 %v2893, %v2905
        %v2913 = vsub.f32 %v2894, %v2903
        %v2918 = vcombine.low %v2910, %v2911
        %v2919 = vcombine.low %v2912, %v2913
        %2920 = vrot.lane.b32.xlu0 %v2918, 92
        %v2921 = vpop.permute.xlu0 %2920
        %2922 = vrot.lane.b32.xlu0 %v2919, 92
        %v2923 = vpop.permute.xlu0 %2922
        %v2924 = vrot.slane %v2921, 4
        %v2925 = vrot.slane %v2923, 4
        %v2926 = vsel %vm272, %v2924, %v2925
        %v2927 = vsel %vm1539, %v2921, %v2926
        %v2928 = vsel %vm1539, %v2923, %v2925
        %2931 = vst [vmem:[%s232] sm:$0xff] %v2927
        %2932 = vst [vmem:[%s232 + $0x8] sm:$0xf] %v2928
        %s2933 = sand.u32 %s142, 1
        %s2934 = scalar_lea.sflag [#allocation4], %s2933
        %s2935 = sand.u32 %s142, 1
        %s2936 = smul.addr %s2935, 12
        %s2937 = scalar_lea.vmem [#allocation3], %s2936
        // Predicated region
        $region41: #{tpu_custom_call.1} parent=39 // pred_check
          %p2938 = pneg %p152
        $region42: #{tpu_custom_call.1} parent=39 // pred_check_branch
          %2940 = sbr.rel (%p2938) target = $region44
        $region43: #{tpu_custom_call.1} parent=39 // pred_region
          %s2942 = ssub.s32 192, 192
          %2943 = vsyncadd %s2934, %s2942
          %s2944 = smul.addr %s19, 3
          %s2945 = smul.addr %s2944, 64
          %s2946 = scalar_lea.hbm %s5, %s2945
          %s2948 = sshll.u32 %s2937, 4
          %s2949 = int_to_ptr.vmem [resolvable:$true] %s2948
          %2951 = dma.vmem_to_hbm [thread:$0]  %s2949, 192, %s2946, %s2934
        $region44: #{tpu_custom_call.1} parent=39 // pred_fallthru
          _
      $region40: #{tpu_custom_call.1} parent=5 // pred_fallthru
        _
      %p2952 = scmp.le.s32.totalorder 2, %s14
      // Predicated region
      $region45: #{tpu_custom_call.1} parent=5 // pred_check
        %p2953 = pneg %p2952
      $region46: #{tpu_custom_call.1} parent=5 // pred_check_branch
        %2955 = sbr.rel (%p2953) target = $region48
      $region47: #{tpu_custom_call.1} parent=5 // pred_region
        %s2956 = ssub.s32 %s14, 2
        // Predicated region
        $region49: #{tpu_custom_call.1} parent=47 // pred_check
          %p2957 = pneg %p158
        $region50: #{tpu_custom_call.1} parent=47 // pred_check_branch
          %2959 = sbr.rel (%p2957) target = $region52
        $region51: #{tpu_custom_call.1} parent=47 // pred_region
          %s2960 = sand.u32 %s143, 1
          %s2961 = scalar_lea.sflag [#allocation4], %s2960
          %s2962 = sand.u32 %s143, 1
          %s2963 = smul.addr %s2962, 12
          %s2964 = scalar_lea.vmem [#allocation3], %s2963
          %2965 = dma.done %s2961, 192
        $region52: #{tpu_custom_call.1} parent=47 // pred_fallthru
          _
      $region48: #{tpu_custom_call.1} parent=5 // pred_fallthru
        _
    $region6: #{tpu_custom_call.1} parent=1 // loop_footer
      %s18 = sadd.s32 1, %s14
    $region7: #{tpu_custom_call.1} parent=1 // loop_footer_branch
      %13 = sbr.rel target = $region3
    $region8: #{tpu_custom_call.1} parent=1 // loop_exit
      _
    %2966 = vsyncpa [#allocation4], 1
    %s2967 = scalar_lea.sflag [#allocation4], 1
    %2968 = vsyncpa %s2967, 1

</llo_original>
